<compile_context>
chip_gen: v5e
topology: v5e:2x2
jax: 0.10.0
libtpu: 0.0.40
codegen_flags: <defaults>
</compile_context>

<pallas_src>
import jax
import jax.numpy as jnp
from jax.experimental import pallas as pl
from jax.experimental.pallas import tpu as pltpu


def add_conv1x1_kernel(a_ref, b_ref, w_ref, o_ref):
    # a_ref, b_ref: (C_in, HW)  -- full inputs, constant index_map (fetched once,
    #                              resident across all grid steps).
    # w_ref:        (TN, C_in)  -- weight tile for this output-channel block.
    # o_ref:        (TN, HW)    -- output tile (lane dim = HW = 49; masked stores,
    #                              still cheaper than a separate transpose pass).
    #
    # The add is recomputed per grid step: it is ~19K elements of VPU work that hides
    # under the MXU matmul. Hoisting it behind `pl.when(pl.program_id(0) == 0)` into
    # scratch would be unsafe under megacore sharding of the "parallel" grid axis
    # (a core that never executes step 0 would read uninitialized scratch).
    x = a_ref[...] + b_ref[...]                      # fused elementwise add (VPU)
    o_ref[...] = jnp.dot(
        w_ref[...], x, preferred_element_type=jnp.float32
    ).astype(o_ref.dtype)                            # 1x1 conv == matmul (MXU)


def add_conv1x1(a_cm, b_cm, w_oc, *, tn=1152):
    """a_cm, b_cm: (C_in, HW) f32; w_oc: (C_out, C_in) f32 -> (C_out, HW) f32."""
    K, M = a_cm.shape
    N, K2 = w_oc.shape
    assert K == K2
    tn = min(tn, N)
    assert N % tn == 0, (N, tn)
    grid = (N // tn,)

    # Accurate cost hint: 2*M*K*N flops, bytes = inputs + weight + output (f32).
    cost = pl.CostEstimate(
        flops=2 * M * K * N,
        transcendentals=0,
        bytes_accessed=(2 * K * M + N * K + N * M) * 4,
    )

    return pl.pallas_call(
        add_conv1x1_kernel,
        out_shape=jax.ShapeDtypeStruct((N, M), jnp.float32),
        grid_spec=pltpu.PrefetchScalarGridSpec(
            num_scalar_prefetch=0,
            grid=grid,
            in_specs=[
                pl.BlockSpec((K, M), lambda j: (0, 0)),   # a: full, resident
                pl.BlockSpec((K, M), lambda j: (0, 0)),   # b: full, resident
                pl.BlockSpec((tn, K), lambda j: (j, 0)),  # weight: stream C_out tiles
            ],
            out_specs=pl.BlockSpec((tn, M), lambda j: (j, 0)),
        ),
        compiler_params=pltpu.CompilerParams(
            dimension_semantics=("parallel",),            # independent C_out tiles
        ),
        cost_estimate=cost,
    )(a_cm, b_cm, w_oc)


def module_forward(x634, x619, conv_weight):
    """Exact semantics of M.forward.

    x634, x619: (1, 384, 7, 7) f32 (NCHW)
    conv_weight: (2304, 384, 1, 1) f32 (PyTorch OIHW, 1x1 kernel)
    returns: (1, 2304, 7, 7) f32
    """
    n, c_in, h, w = x634.shape
    c_out = conv_weight.shape[0]
    assert n == 1  # free NCHW <-> (C, HW) reshapes rely on batch == 1

    # NCHW (N=1) -> (C_in, H*W): pure reshape, no data movement.
    a_cm = x634.reshape(c_in, h * w)
    b_cm = x619.reshape(c_in, h * w)

    # (C_out, C_in, 1, 1) -> (C_out, C_in): pure reshape, no transpose.
    w_oc = conv_weight.reshape(c_out, c_in)

    out_cm = add_conv1x1(a_cm, b_cm, w_oc)            # (C_out, H*W)

    # (C_out, H*W) -> NCHW: pure reshape, no transpose.
    return out_cm.reshape(n, c_out, h, w)


if __name__ == "__main__":
    key = jax.random.PRNGKey(0)
    k1, k2, k3 = jax.random.split(key, 3)

    # Shapes implied by the module's forward / conv definition.
    N, C_IN, H, W = 1, 384, 7, 7
    C_OUT = 2304

    x634 = jax.random.normal(k1, (N, C_IN, H, W), dtype=jnp.float32)
    x619 = jax.random.normal(k2, (N, C_IN, H, W), dtype=jnp.float32)

    # Deterministic conv weight, PyTorch Conv2d layout (out, in, kh, kw).
    fan_in = C_IN  # 1x1 kernel
    bound = 1.0 / (fan_in ** 0.5)
    conv_w = jax.random.uniform(
        k3, (C_OUT, C_IN, 1, 1), dtype=jnp.float32, minval=-bound, maxval=bound
    )

    out = module_forward(x634, x619, conv_w)
    out = jax.block_until_ready(out)

    # Sanity check against plain-JAX reference.
    x_sum = x634 + x619
    ref = jnp.einsum("nchw,oc->nohw", x_sum, conv_w[:, :, 0, 0])
    assert out.shape == (N, C_OUT, H, W), out.shape
    assert jnp.allclose(out, ref, atol=1e-4, rtol=1e-4)

    print("KERNEL_OK")
</pallas_src>

<mosaic_0001>
module attributes {stable_mosaic.version = 11 : i64} {
  func.func @add_conv1x1_kernel(%arg0: i32, %arg1: memref<384x49xf32, #tpu.memory_space<vmem>>, %arg2: memref<384x49xf32, #tpu.memory_space<vmem>>, %arg3: memref<1152x384xf32, #tpu.memory_space<vmem>>, %arg4: memref<1152x49xf32, #tpu.memory_space<vmem>>) attributes {dimension_semantics = [#tpu.dimension_semantics<parallel>], iteration_bounds = array<i64: 2>, scalar_prefetch = 0 : i64, scratch_operands = 0 : i64, tpu.core_type = #tpu.core_type<tc>, window_params = [{pipeline_mode = #tpu.pipeline_mode<synchronous>, transform_indices = @transform_0, window_bounds = array<i64: 384, 49>}, {pipeline_mode = #tpu.pipeline_mode<synchronous>, transform_indices = @transform_1, window_bounds = array<i64: 384, 49>}, {transform_indices = @transform_2, window_bounds = array<i64: 1152, 384>}, {transform_indices = @transform_3, window_bounds = array<i64: 1152, 49>}]} {
    %c0 = arith.constant 0 : index
    %c0_0 = arith.constant 0 : index
    %0 = vector.load %arg1[%c0, %c0_0] : memref<384x49xf32, #tpu.memory_space<vmem>>, vector<384x49xf32>
    %c0_1 = arith.constant 0 : index
    %c0_2 = arith.constant 0 : index
    %1 = vector.load %arg2[%c0_1, %c0_2] : memref<384x49xf32, #tpu.memory_space<vmem>>, vector<384x49xf32>
    %2 = arith.addf %0, %1 : vector<384x49xf32>
    %c0_3 = arith.constant 0 : index
    %c0_4 = arith.constant 0 : index
    %3 = vector.load %arg3[%c0_3, %c0_4] : memref<1152x384xf32, #tpu.memory_space<vmem>>, vector<1152x384xf32>
    %cst = arith.constant dense<0.000000e+00> : vector<1152x49xf32>
    %4 = tpu.matmul %3, %2, %cst {dimension_numbers = #tpu.dot_dimension_numbers<[1], [0], [0], [1], [0, 0, 1, 1], [], []>} : vector<1152x384xf32>, vector<384x49xf32>, vector<1152x49xf32> -> vector<1152x49xf32>
    %c0_5 = arith.constant 0 : index
    %c0_6 = arith.constant 0 : index
    %5 = vector.load %arg4[%c0_5, %c0_6] : memref<1152x49xf32, #tpu.memory_space<vmem>>, vector<1152x49xf32>
    tpu.vector_store %arg4[%c0_5, %c0_6], %4 {strides = array<i32>} : memref<1152x49xf32, #tpu.memory_space<vmem>>, vector<1152x49xf32>,
    return
  }
  func.func @transform_0(%arg0: i32) -> (i32, i32) {
    %c0_i32 = arith.constant 0 : i32
    %c0_i32_0 = arith.constant 0 : i32
    %c0_i32_1 = arith.constant 0 : i32
    return %c0_i32, %c0_i32_0 : i32, i32
  }
  func.func @transform_1(%arg0: i32) -> (i32, i32) {
    %c0_i32 = arith.constant 0 : i32
    %c0_i32_0 = arith.constant 0 : i32
    %c0_i32_1 = arith.constant 0 : i32
    return %c0_i32, %c0_i32_0 : i32, i32
  }
  func.func @transform_2(%arg0: i32) -> (i32, i32) {
    %c0_i32 = arith.constant 0 : i32
    %c0_i32_0 = arith.constant 0 : i32
    return %arg0, %c0_i32 : i32, i32
  }
  func.func @transform_3(%arg0: i32) -> (i32, i32) {
    %c0_i32 = arith.constant 0 : i32
    %c0_i32_0 = arith.constant 0 : i32
    return %arg0, %c0_i32 : i32, i32
  }
}

</mosaic_0001>

<llo_original>
// kernel: tpu_custom_call.1
$region0: #{tpu_custom_call.1}
  #allocation0 [shape = 'u32[]', space=smem, size = 0x4, offset = 0x4, fixed_abs, tag = 'smem constant byte address 0x4 - core index']
  #allocation1 [shape = 'u32[72,128]{1,0:T(1,128)}', space=vmem, size = 0x9000, scoped, tag = 'internal scratch']
  %s0 = inlined_call_operand.vmem [shape: f32[384,49], index: 0, kind: input, shape index: {}]
  %s1 = inlined_call_operand.vmem [shape: f32[384,49], index: 1, kind: input, shape index: {}]
  %s2 = inlined_call_operand.hbm [shape: f32[2304,384], index: 2, kind: input, shape index: {}]
  %s3 = inlined_call_operand.vmem [shape: f32[2304,49], index: 3, kind: output, shape index: {}]
  %s4 = sld [smem:[#allocation0]]
  $region49: #{tpu_custom_call.1} parent=0
    _
  %s6 = ssub.s32 1, %s4
  %s7 = scalar_select 0, %s6, %s4
  $region1: #{tpu_custom_call.1} parent=0
    #allocation2 [shape = 'u8[3538944]{0}', space=vmem, size = 0x360000, scoped, tag = 'input window, operand 2']
    #allocation3 [shape = 's32[2]{0}', space=sflag, size = 0x8, scoped, tag = 'scoped memory for tpu_custom_call.1']
    %8 = vsyncpa [#allocation3], 0
    %s9 = scalar_lea.sflag [#allocation3], 1
    %10 = vsyncpa %s9, 0
    loop: start=0, step=1, limit=4
    $region2: #{tpu_custom_call.1} parent=1 // loop_pre_header
      _
    $region3: #{tpu_custom_call.1} parent=1 // loop_header
      %s12 = sphi 0, %s16
      %p13 = scmp.ge.s32.totalorder %s12, 4
      %s20 = sphi 0, %s20
      %s22 = sphi 0, %s20
      %s23 = sphi 0, %s22
      %s37 = sphi 0, %s23
      %s41 = sphi 0, %s41
      %s43 = sphi 0, %s41
      %s44 = sphi 0, %s43
      %s58 = sphi 0, %s44
      %s64 = sphi 0, %s66
      %s67 = sphi 0, %s64
      %s68 = sphi 0, %s67
      %s84 = sphi 0, %s68
      %s90 = sphi 0, %s92
      %s93 = sphi 0, %s90
      %s94 = sphi 0, %s93
      %s110 = sphi 0, %s94
    $region4: #{tpu_custom_call.1} parent=1 // loop_header_branch
      %15 = sbr.rel (%p13) target = $region8
    $region5: #{tpu_custom_call.1} parent=1 // loop_body
      %s17 = ssub.s32 %s12, 1
      %s18 = ssub.s32 %s12, 2
      %s19 = sadd.s32 %s12, 1
      %s21 = sadd.s32 %s20, 1
      %p24 = scmp.eq.s32.totalorder %s12, 1
      %p25 = scmp.ne.s32.totalorder %s20, %s22
      %p26 = scmp.eq.s32.totalorder %s12, 0
      %p27 = por %p25, %p26
      %p28 = scmp.ne.s32.totalorder %s20, %s22
      %p29 = scmp.eq.s32.totalorder %s17, 1
      %p30 = por %p28, %p29
      %p31 = scmp.ne.s32.totalorder %s22, %s23
      %p32 = scmp.eq.s32.totalorder %s17, 0
      %p33 = por %p31, %p32
      %p34 = scmp.ne.s32.totalorder %s22, %s23
      %p35 = scmp.eq.s32.totalorder %s18, 1
      %p36 = por %p34, %p35
      %p38 = scmp.ne.s32.totalorder %s23, %s37
      %p39 = scmp.eq.s32.totalorder %s18, 0
      %p40 = por %p38, %p39
      %s42 = sadd.s32 %s41, 1
      %p45 = scmp.eq.s32.totalorder %s12, 1
      %p46 = scmp.ne.s32.totalorder %s41, %s43
      %p47 = scmp.eq.s32.totalorder %s12, 0
      %p48 = por %p46, %p47
      %p49 = scmp.ne.s32.totalorder %s41, %s43
      %p50 = scmp.eq.s32.totalorder %s17, 1
      %p51 = por %p49, %p50
      %p52 = scmp.ne.s32.totalorder %s43, %s44
      %p53 = scmp.eq.s32.totalorder %s17, 0
      %p54 = por %p52, %p53
      %p55 = scmp.ne.s32.totalorder %s43, %s44
      %p56 = scmp.eq.s32.totalorder %s18, 1
      %p57 = por %p55, %p56
      %p59 = scmp.ne.s32.totalorder %s44, %s58
      %p60 = scmp.eq.s32.totalorder %s18, 0
      %p61 = por %p59, %p60
      %s62 = ssub.s32 %s12, %s19
      %p63 = scmp.eq.s32.totalorder %s62, 0
      %s65 = sadd.s32 %s64, 1
      %s66 = scalar_select %p63, %s64, %s65
      %p69 = pneg %p63
      %p70 = scmp.eq.s32.totalorder %s12, 1
      %p71 = por %p69, %p70
      %p72 = scmp.ne.s32.totalorder %s64, %s67
      %p73 = scmp.eq.s32.totalorder %s12, 0
      %p74 = por %p72, %p73
      %p75 = scmp.ne.s32.totalorder %s64, %s67
      %p76 = scmp.eq.s32.totalorder %s17, 1
      %p77 = por %p75, %p76
      %p78 = scmp.ne.s32.totalorder %s67, %s68
      %p79 = scmp.eq.s32.totalorder %s17, 0
      %p80 = por %p78, %p79
      %p81 = scmp.ne.s32.totalorder %s67, %s68
      %p82 = scmp.eq.s32.totalorder %s18, 1
      %p83 = por %p81, %p82
      %p85 = scmp.ne.s32.totalorder %s68, %s84
      %p86 = scmp.eq.s32.totalorder %s18, 0
      %p87 = por %p85, %p86
      %s88 = ssub.s32 %s12, %s19
      %p89 = scmp.eq.s32.totalorder %s88, 0
      %s91 = sadd.s32 %s90, 1
      %s92 = scalar_select %p89, %s90, %s91
      %p95 = pneg %p89
      %p96 = scmp.eq.s32.totalorder %s12, 1
      %p97 = por %p95, %p96
      %p98 = scmp.ne.s32.totalorder %s90, %s93
      %p99 = scmp.eq.s32.totalorder %s12, 0
      %p100 = por %p98, %p99
      %p101 = scmp.ne.s32.totalorder %s90, %s93
      %p102 = scmp.eq.s32.totalorder %s17, 1
      %p103 = por %p101, %p102
      %p104 = scmp.ne.s32.totalorder %s93, %s94
      %p105 = scmp.eq.s32.totalorder %s17, 0
      %p106 = por %p104, %p105
      %p107 = scmp.ne.s32.totalorder %s93, %s94
      %p108 = scmp.eq.s32.totalorder %s18, 1
      %p109 = por %p107, %p108
      %p111 = scmp.ne.s32.totalorder %s94, %s110
      %p112 = scmp.eq.s32.totalorder %s18, 0
      %p113 = por %p111, %p112
      %p114 = scmp.le.s32.totalorder 1, %s12
      %p115 = scmp.lt.s32.totalorder %s12, 3
      %p116 = pnand %p114, %p115
      %p117 = pneg %p116
      // Predicated region
      $region9: #{tpu_custom_call.1} parent=5 // pred_check
        _
      $region10: #{tpu_custom_call.1} parent=5 // pred_check_branch
        %119 = sbr.rel (%p116) target = $region12
      $region11: #{tpu_custom_call.1} parent=5 // pred_region
        %s120 = ssub.s32 %s12, 1
        // Predicated region
        $region13: #{tpu_custom_call.1} parent=11 // pred_check
          %p121 = pneg %p33
        $region14: #{tpu_custom_call.1} parent=11 // pred_check_branch
          %123 = sbr.rel (%p121) target = $region16
        $region15: #{tpu_custom_call.1} parent=11 // pred_region
          _
        $region16: #{tpu_custom_call.1} parent=11 // pred_fallthru
          _
        // Predicated region
        $region17: #{tpu_custom_call.1} parent=11 // pred_check
          %p124 = pneg %p54
        $region18: #{tpu_custom_call.1} parent=11 // pred_check_branch
          %126 = sbr.rel (%p124) target = $region20
        $region19: #{tpu_custom_call.1} parent=11 // pred_region
          _
        $region20: #{tpu_custom_call.1} parent=11 // pred_fallthru
          _
      $region12: #{tpu_custom_call.1} parent=5 // pred_fallthru
        _
      %p127 = scmp.lt.s32.totalorder %s12, 2
      // Predicated region
      $region21: #{tpu_custom_call.1} parent=5 // pred_check
        %p128 = pneg %p127
      $region22: #{tpu_custom_call.1} parent=5 // pred_check_branch
        %130 = sbr.rel (%p128) target = $region24
      $region23: #{tpu_custom_call.1} parent=5 // pred_region
        // Predicated region
        $region25: #{tpu_custom_call.1} parent=23 // pred_check
          %p131 = pneg %p74
        $region26: #{tpu_custom_call.1} parent=23 // pred_check_branch
          %133 = sbr.rel (%p131) target = $region28
        $region27: #{tpu_custom_call.1} parent=23 // pred_region
          %s134 = sand.u32 %s64, 1
          %s135 = scalar_lea.sflag [#allocation3], %s134
          %s136 = sand.u32 %s64, 1
          %s137 = smul.addr %s136, 3456
          %s138 = scalar_lea.vmem [#allocation2], %s137
          %s139 = smul.u32 144, %s12
          %141 = vsyncadd %s135, 0
          %s142 = smul.addr %s139, 3
          %s143 = smul.addr %s142, 8
          %s144 = scalar_lea.hbm %s2, %s143
          %s145 = sshll.u32 %s144, 4
          %s146 = int_to_ptr.hbm [resolvable:$true] %s145
          %s147 = sshll.u32 %s138, 4
          %s148 = int_to_ptr.vmem [resolvable:$true] %s147
          %153 = dma.hbm_to_vmem [thread:$0]  %s146, 55296, %s148, %s135, 384, 384, 24
        $region28: #{tpu_custom_call.1} parent=23 // pred_fallthru
          _
      $region24: #{tpu_custom_call.1} parent=5 // pred_fallthru
        _
      %p154 = scmp.le.s32.totalorder 1, %s12
      %p155 = scmp.lt.s32.totalorder %s12, 3
      %p156 = pnand %p154, %p155
      %p157 = pneg %p156
      // Predicated region
      $region29: #{tpu_custom_call.1} parent=5 // pred_check
        _
      $region30: #{tpu_custom_call.1} parent=5 // pred_check_branch
        %159 = sbr.rel (%p156) target = $region32
      $region31: #{tpu_custom_call.1} parent=5 // pred_region
        %s160 = ssub.s32 %s12, 1
        %s161 = sand.u32 %s67, 1
        %s162 = scalar_lea.sflag [#allocation3], %s161
        %s163 = sand.u32 %s67, 1
        %s164 = smul.addr %s163, 3456
        %s165 = scalar_lea.vmem [#allocation2], %s164
        // Predicated region
        $region33: #{tpu_custom_call.1} parent=31 // pred_check
          %p166 = pneg %p80
        $region34: #{tpu_custom_call.1} parent=31 // pred_check_branch
          %168 = sbr.rel (%p166) target = $region36
        $region35: #{tpu_custom_call.1} parent=31 // pred_region
          %170 = dma.done %s162, 55296
        $region36: #{tpu_custom_call.1} parent=31 // pred_fallthru
          _
        %p171 = pneg %p33
        %p172 = pneg %p30
        %p173 = pneg %p54
        %p174 = pneg %p51
        %s175 = sand.u32 %s67, 1
        %s176 = scalar_lea.sflag [#allocation3], %s175
        %s177 = sand.u32 %s67, 1
        %s178 = smul.addr %s177, 3456
        %s179 = scalar_lea.vmem [#allocation2], %s178
        %p180 = pneg %p80
        %p181 = pneg %p77
        %p182 = pneg %p106
        %p183 = pneg %p103
        %s184 = smul.u32 144, %s17
        %p185 = scmp.lt.s32.totalorder %s184, 287
        %s186 = scalar_select %p185, %s184, 287
        %s187 = smul.addr %s186, 8
        %s188 = scalar_lea.vmem %s3, %s187
        %s189 = smul.u32 144, %s17
        %s190 = smul.u32 144, %s17
        %p191 = scmp.lt.s32.totalorder %s190, 287
        %s192 = scalar_select %p191, %s190, 287
        %s193 = smul.addr %s192, 8
        %s194 = scalar_lea.vmem %s3, %s193
        %s195 = smul.u32 144, %s17
        %v196 = vld [vmem:[%s0] sm:$0xff]
        %v197 = vld [vmem:[%s0 + $0x8] sm:$0xff]
        %v198 = vld [vmem:[%s0 + $0x10] sm:$0xff]
        %v199 = vld [vmem:[%s0 + $0x18] sm:$0xff]
        %v200 = vld [vmem:[%s0 + $0x20] sm:$0xff]
        %v201 = vld [vmem:[%s0 + $0x28] sm:$0xff]
        %v202 = vld [vmem:[%s0 + $0x30] sm:$0xff]
        %v203 = vld [vmem:[%s0 + $0x38] sm:$0xff]
        %v204 = vld [vmem:[%s0 + $0x40] sm:$0xff]
        %v205 = vld [vmem:[%s0 + $0x48] sm:$0xff]
        %v206 = vld [vmem:[%s0 + $0x50] sm:$0xff]
        %v207 = vld [vmem:[%s0 + $0x58] sm:$0xff]
        %v208 = vld [vmem:[%s0 + $0x60] sm:$0xff]
        %v209 = vld [vmem:[%s0 + $0x68] sm:$0xff]
        %v210 = vld [vmem:[%s0 + $0x70] sm:$0xff]
        %v211 = vld [vmem:[%s0 + $0x78] sm:$0xff]
        %v212 = vld [vmem:[%s0 + $0x80] sm:$0xff]
        %v213 = vld [vmem:[%s0 + $0x88] sm:$0xff]
        %v214 = vld [vmem:[%s0 + $0x90] sm:$0xff]
        %v215 = vld [vmem:[%s0 + $0x98] sm:$0xff]
        %v216 = vld [vmem:[%s0 + $0xa0] sm:$0xff]
        %v217 = vld [vmem:[%s0 + $0xa8] sm:$0xff]
        %v218 = vld [vmem:[%s0 + $0xb0] sm:$0xff]
        %v219 = vld [vmem:[%s0 + $0xb8] sm:$0xff]
        %v220 = vld [vmem:[%s0 + $0xc0] sm:$0xff]
        %v221 = vld [vmem:[%s0 + $0xc8] sm:$0xff]
        %v222 = vld [vmem:[%s0 + $0xd0] sm:$0xff]
        %v223 = vld [vmem:[%s0 + $0xd8] sm:$0xff]
        %v224 = vld [vmem:[%s0 + $0xe0] sm:$0xff]
        %v225 = vld [vmem:[%s0 + $0xe8] sm:$0xff]
        %v226 = vld [vmem:[%s0 + $0xf0] sm:$0xff]
        %v227 = vld [vmem:[%s0 + $0xf8] sm:$0xff]
        %v228 = vld [vmem:[%s0 + $0x100] sm:$0xff]
        %v229 = vld [vmem:[%s0 + $0x108] sm:$0xff]
        %v230 = vld [vmem:[%s0 + $0x110] sm:$0xff]
        %v231 = vld [vmem:[%s0 + $0x118] sm:$0xff]
        %v232 = vld [vmem:[%s0 + $0x120] sm:$0xff]
        %v233 = vld [vmem:[%s0 + $0x128] sm:$0xff]
        %v234 = vld [vmem:[%s0 + $0x130] sm:$0xff]
        %v235 = vld [vmem:[%s0 + $0x138] sm:$0xff]
        %v236 = vld [vmem:[%s0 + $0x140] sm:$0xff]
        %v237 = vld [vmem:[%s0 + $0x148] sm:$0xff]
        %v238 = vld [vmem:[%s0 + $0x150] sm:$0xff]
        %v239 = vld [vmem:[%s0 + $0x158] sm:$0xff]
        %v240 = vld [vmem:[%s0 + $0x160] sm:$0xff]
        %v241 = vld [vmem:[%s0 + $0x168] sm:$0xff]
        %v242 = vld [vmem:[%s0 + $0x170] sm:$0xff]
        %v243 = vld [vmem:[%s0 + $0x178] sm:$0xff]
        %v244 = vld [vmem:[%s1] sm:$0xff]
        %v245 = vld [vmem:[%s1 + $0x8] sm:$0xff]
        %v246 = vld [vmem:[%s1 + $0x10] sm:$0xff]
        %v247 = vld [vmem:[%s1 + $0x18] sm:$0xff]
        %v248 = vld [vmem:[%s1 + $0x20] sm:$0xff]
        %v249 = vld [vmem:[%s1 + $0x28] sm:$0xff]
        %v250 = vld [vmem:[%s1 + $0x30] sm:$0xff]
        %v251 = vld [vmem:[%s1 + $0x38] sm:$0xff]
        %v252 = vld [vmem:[%s1 + $0x40] sm:$0xff]
        %v253 = vld [vmem:[%s1 + $0x48] sm:$0xff]
        %v254 = vld [vmem:[%s1 + $0x50] sm:$0xff]
        %v255 = vld [vmem:[%s1 + $0x58] sm:$0xff]
        %v256 = vld [vmem:[%s1 + $0x60] sm:$0xff]
        %v257 = vld [vmem:[%s1 + $0x68] sm:$0xff]
        %v258 = vld [vmem:[%s1 + $0x70] sm:$0xff]
        %v259 = vld [vmem:[%s1 + $0x78] sm:$0xff]
        %v260 = vld [vmem:[%s1 + $0x80] sm:$0xff]
        %v261 = vld [vmem:[%s1 + $0x88] sm:$0xff]
        %v262 = vld [vmem:[%s1 + $0x90] sm:$0xff]
        %v263 = vld [vmem:[%s1 + $0x98] sm:$0xff]
        %v264 = vld [vmem:[%s1 + $0xa0] sm:$0xff]
        %v265 = vld [vmem:[%s1 + $0xa8] sm:$0xff]
        %v266 = vld [vmem:[%s1 + $0xb0] sm:$0xff]
        %v267 = vld [vmem:[%s1 + $0xb8] sm:$0xff]
        %v268 = vld [vmem:[%s1 + $0xc0] sm:$0xff]
        %v269 = vld [vmem:[%s1 + $0xc8] sm:$0xff]
        %v270 = vld [vmem:[%s1 + $0xd0] sm:$0xff]
        %v271 = vld [vmem:[%s1 + $0xd8] sm:$0xff]
        %v272 = vld [vmem:[%s1 + $0xe0] sm:$0xff]
        %v273 = vld [vmem:[%s1 + $0xe8] sm:$0xff]
        %v274 = vld [vmem:[%s1 + $0xf0] sm:$0xff]
        %v275 = vld [vmem:[%s1 + $0xf8] sm:$0xff]
        %v276 = vld [vmem:[%s1 + $0x100] sm:$0xff]
        %v277 = vld [vmem:[%s1 + $0x108] sm:$0xff]
        %v278 = vld [vmem:[%s1 + $0x110] sm:$0xff]
        %v279 = vld [vmem:[%s1 + $0x118] sm:$0xff]
        %v280 = vld [vmem:[%s1 + $0x120] sm:$0xff]
        %v281 = vld [vmem:[%s1 + $0x128] sm:$0xff]
        %v282 = vld [vmem:[%s1 + $0x130] sm:$0xff]
        %v283 = vld [vmem:[%s1 + $0x138] sm:$0xff]
        %v284 = vld [vmem:[%s1 + $0x140] sm:$0xff]
        %v285 = vld [vmem:[%s1 + $0x148] sm:$0xff]
        %v286 = vld [vmem:[%s1 + $0x150] sm:$0xff]
        %v287 = vld [vmem:[%s1 + $0x158] sm:$0xff]
        %v288 = vld [vmem:[%s1 + $0x160] sm:$0xff]
        %v289 = vld [vmem:[%s1 + $0x168] sm:$0xff]
        %v290 = vld [vmem:[%s1 + $0x170] sm:$0xff]
        %v291 = vld [vmem:[%s1 + $0x178] sm:$0xff]
        %v292 = vadd.f32 %v196, %v244
        %v293 = vadd.f32 %v197, %v245
        %v294 = vadd.f32 %v198, %v246
        %v295 = vadd.f32 %v199, %v247
        %v296 = vadd.f32 %v200, %v248
        %v297 = vadd.f32 %v201, %v249
        %v298 = vadd.f32 %v202, %v250
        %v299 = vadd.f32 %v203, %v251
        %v300 = vadd.f32 %v204, %v252
        %v301 = vadd.f32 %v205, %v253
        %v302 = vadd.f32 %v206, %v254
        %v303 = vadd.f32 %v207, %v255
        %v304 = vadd.f32 %v208, %v256
        %v305 = vadd.f32 %v209, %v257
        %v306 = vadd.f32 %v210, %v258
        %v307 = vadd.f32 %v211, %v259
        %v308 = vadd.f32 %v212, %v260
        %v309 = vadd.f32 %v213, %v261
        %v310 = vadd.f32 %v214, %v262
        %v311 = vadd.f32 %v215, %v263
        %v312 = vadd.f32 %v216, %v264
        %v313 = vadd.f32 %v217, %v265
        %v314 = vadd.f32 %v218, %v266
        %v315 = vadd.f32 %v219, %v267
        %v316 = vadd.f32 %v220, %v268
        %v317 = vadd.f32 %v221, %v269
        %v318 = vadd.f32 %v222, %v270
        %v319 = vadd.f32 %v223, %v271
        %v320 = vadd.f32 %v224, %v272
        %v321 = vadd.f32 %v225, %v273
        %v322 = vadd.f32 %v226, %v274
        %v323 = vadd.f32 %v227, %v275
        %v324 = vadd.f32 %v228, %v276
        %v325 = vadd.f32 %v229, %v277
        %v326 = vadd.f32 %v230, %v278
        %v327 = vadd.f32 %v231, %v279
        %v328 = vadd.f32 %v232, %v280
        %v329 = vadd.f32 %v233, %v281
        %v330 = vadd.f32 %v234, %v282
        %v331 = vadd.f32 %v235, %v283
        %v332 = vadd.f32 %v236, %v284
        %v333 = vadd.f32 %v237, %v285
        %v334 = vadd.f32 %v238, %v286
        %v335 = vadd.f32 %v239, %v287
        %v336 = vadd.f32 %v240, %v288
        %v337 = vadd.f32 %v241, %v289
        %v338 = vadd.f32 %v242, %v290
        %v339 = vadd.f32 %v243, %v291
        %v340 = vld [vmem:[%s165] sm:$0xff]
        %v341 = vld [vmem:[%s165 + $0x8] sm:$0xff]
        %v342 = vld [vmem:[%s165 + $0x10] sm:$0xff]
        %v343 = vld [vmem:[%s165 + $0x18] sm:$0xff]
        %v344 = vld [vmem:[%s165 + $0x20] sm:$0xff]
        %v345 = vld [vmem:[%s165 + $0x28] sm:$0xff]
        %v346 = vld [vmem:[%s165 + $0x30] sm:$0xff]
        %v347 = vld [vmem:[%s165 + $0x38] sm:$0xff]
        %v348 = vld [vmem:[%s165 + $0x40] sm:$0xff]
        %v349 = vld [vmem:[%s165 + $0x48] sm:$0xff]
        %v350 = vld [vmem:[%s165 + $0x50] sm:$0xff]
        %v351 = vld [vmem:[%s165 + $0x58] sm:$0xff]
        %v352 = vld [vmem:[%s165 + $0x60] sm:$0xff]
        %v353 = vld [vmem:[%s165 + $0x68] sm:$0xff]
        %v354 = vld [vmem:[%s165 + $0x70] sm:$0xff]
        %v355 = vld [vmem:[%s165 + $0x78] sm:$0xff]
        %v356 = vld [vmem:[%s165 + $0x80] sm:$0xff]
        %v357 = vld [vmem:[%s165 + $0x88] sm:$0xff]
        %v358 = vld [vmem:[%s165 + $0x90] sm:$0xff]
        %v359 = vld [vmem:[%s165 + $0x98] sm:$0xff]
        %v360 = vld [vmem:[%s165 + $0xa0] sm:$0xff]
        %v361 = vld [vmem:[%s165 + $0xa8] sm:$0xff]
        %v362 = vld [vmem:[%s165 + $0xb0] sm:$0xff]
        %v363 = vld [vmem:[%s165 + $0xb8] sm:$0xff]
        %v364 = vld [vmem:[%s165 + $0xc0] sm:$0xff]
        %v365 = vld [vmem:[%s165 + $0xc8] sm:$0xff]
        %v366 = vld [vmem:[%s165 + $0xd0] sm:$0xff]
        %v367 = vld [vmem:[%s165 + $0xd8] sm:$0xff]
        %v368 = vld [vmem:[%s165 + $0xe0] sm:$0xff]
        %v369 = vld [vmem:[%s165 + $0xe8] sm:$0xff]
        %v370 = vld [vmem:[%s165 + $0xf0] sm:$0xff]
        %v371 = vld [vmem:[%s165 + $0xf8] sm:$0xff]
        %v372 = vld [vmem:[%s165 + $0x100] sm:$0xff]
        %v373 = vld [vmem:[%s165 + $0x108] sm:$0xff]
        %v374 = vld [vmem:[%s165 + $0x110] sm:$0xff]
        %v375 = vld [vmem:[%s165 + $0x118] sm:$0xff]
        %v376 = vld [vmem:[%s165 + $0x120] sm:$0xff]
        %v377 = vld [vmem:[%s165 + $0x128] sm:$0xff]
        %v378 = vld [vmem:[%s165 + $0x130] sm:$0xff]
        %v379 = vld [vmem:[%s165 + $0x138] sm:$0xff]
        %v380 = vld [vmem:[%s165 + $0x140] sm:$0xff]
        %v381 = vld [vmem:[%s165 + $0x148] sm:$0xff]
        %v382 = vld [vmem:[%s165 + $0x150] sm:$0xff]
        %v383 = vld [vmem:[%s165 + $0x158] sm:$0xff]
        %v384 = vld [vmem:[%s165 + $0x160] sm:$0xff]
        %v385 = vld [vmem:[%s165 + $0x168] sm:$0xff]
        %v386 = vld [vmem:[%s165 + $0x170] sm:$0xff]
        %v387 = vld [vmem:[%s165 + $0x178] sm:$0xff]
        %v388 = vld [vmem:[%s165 + $0x180] sm:$0xff]
        %v389 = vld [vmem:[%s165 + $0x188] sm:$0xff]
        %v390 = vld [vmem:[%s165 + $0x190] sm:$0xff]
        %v391 = vld [vmem:[%s165 + $0x198] sm:$0xff]
        %v392 = vld [vmem:[%s165 + $0x1a0] sm:$0xff]
        %v393 = vld [vmem:[%s165 + $0x1a8] sm:$0xff]
        %v394 = vld [vmem:[%s165 + $0x1b0] sm:$0xff]
        %v395 = vld [vmem:[%s165 + $0x1b8] sm:$0xff]
        %v396 = vld [vmem:[%s165 + $0x1c0] sm:$0xff]
        %v397 = vld [vmem:[%s165 + $0x1c8] sm:$0xff]
        %v398 = vld [vmem:[%s165 + $0x1d0] sm:$0xff]
        %v399 = vld [vmem:[%s165 + $0x1d8] sm:$0xff]
        %v400 = vld [vmem:[%s165 + $0x1e0] sm:$0xff]
        %v401 = vld [vmem:[%s165 + $0x1e8] sm:$0xff]
        %v402 = vld [vmem:[%s165 + $0x1f0] sm:$0xff]
        %v403 = vld [vmem:[%s165 + $0x1f8] sm:$0xff]
        %v404 = vld [vmem:[%s165 + $0x200] sm:$0xff]
        %v405 = vld [vmem:[%s165 + $0x208] sm:$0xff]
        %v406 = vld [vmem:[%s165 + $0x210] sm:$0xff]
        %v407 = vld [vmem:[%s165 + $0x218] sm:$0xff]
        %v408 = vld [vmem:[%s165 + $0x220] sm:$0xff]
        %v409 = vld [vmem:[%s165 + $0x228] sm:$0xff]
        %v410 = vld [vmem:[%s165 + $0x230] sm:$0xff]
        %v411 = vld [vmem:[%s165 + $0x238] sm:$0xff]
        %v412 = vld [vmem:[%s165 + $0x240] sm:$0xff]
        %v413 = vld [vmem:[%s165 + $0x248] sm:$0xff]
        %v414 = vld [vmem:[%s165 + $0x250] sm:$0xff]
        %v415 = vld [vmem:[%s165 + $0x258] sm:$0xff]
        %v416 = vld [vmem:[%s165 + $0x260] sm:$0xff]
        %v417 = vld [vmem:[%s165 + $0x268] sm:$0xff]
        %v418 = vld [vmem:[%s165 + $0x270] sm:$0xff]
        %v419 = vld [vmem:[%s165 + $0x278] sm:$0xff]
        %v420 = vld [vmem:[%s165 + $0x280] sm:$0xff]
        %v421 = vld [vmem:[%s165 + $0x288] sm:$0xff]
        %v422 = vld [vmem:[%s165 + $0x290] sm:$0xff]
        %v423 = vld [vmem:[%s165 + $0x298] sm:$0xff]
        %v424 = vld [vmem:[%s165 + $0x2a0] sm:$0xff]
        %v425 = vld [vmem:[%s165 + $0x2a8] sm:$0xff]
        %v426 = vld [vmem:[%s165 + $0x2b0] sm:$0xff]
        %v427 = vld [vmem:[%s165 + $0x2b8] sm:$0xff]
        %v428 = vld [vmem:[%s165 + $0x2c0] sm:$0xff]
        %v429 = vld [vmem:[%s165 + $0x2c8] sm:$0xff]
        %v430 = vld [vmem:[%s165 + $0x2d0] sm:$0xff]
        %v431 = vld [vmem:[%s165 + $0x2d8] sm:$0xff]
        %v432 = vld [vmem:[%s165 + $0x2e0] sm:$0xff]
        %v433 = vld [vmem:[%s165 + $0x2e8] sm:$0xff]
        %v434 = vld [vmem:[%s165 + $0x2f0] sm:$0xff]
        %v435 = vld [vmem:[%s165 + $0x2f8] sm:$0xff]
        %v436 = vld [vmem:[%s165 + $0x300] sm:$0xff]
        %v437 = vld [vmem:[%s165 + $0x308] sm:$0xff]
        %v438 = vld [vmem:[%s165 + $0x310] sm:$0xff]
        %v439 = vld [vmem:[%s165 + $0x318] sm:$0xff]
        %v440 = vld [vmem:[%s165 + $0x320] sm:$0xff]
        %v441 = vld [vmem:[%s165 + $0x328] sm:$0xff]
        %v442 = vld [vmem:[%s165 + $0x330] sm:$0xff]
        %v443 = vld [vmem:[%s165 + $0x338] sm:$0xff]
        %v444 = vld [vmem:[%s165 + $0x340] sm:$0xff]
        %v445 = vld [vmem:[%s165 + $0x348] sm:$0xff]
        %v446 = vld [vmem:[%s165 + $0x350] sm:$0xff]
        %v447 = vld [vmem:[%s165 + $0x358] sm:$0xff]
        %v448 = vld [vmem:[%s165 + $0x360] sm:$0xff]
        %v449 = vld [vmem:[%s165 + $0x368] sm:$0xff]
        %v450 = vld [vmem:[%s165 + $0x370] sm:$0xff]
        %v451 = vld [vmem:[%s165 + $0x378] sm:$0xff]
        %v452 = vld [vmem:[%s165 + $0x380] sm:$0xff]
        %v453 = vld [vmem:[%s165 + $0x388] sm:$0xff]
        %v454 = vld [vmem:[%s165 + $0x390] sm:$0xff]
        %v455 = vld [vmem:[%s165 + $0x398] sm:$0xff]
        %v456 = vld [vmem:[%s165 + $0x3a0] sm:$0xff]
        %v457 = vld [vmem:[%s165 + $0x3a8] sm:$0xff]
        %v458 = vld [vmem:[%s165 + $0x3b0] sm:$0xff]
        %v459 = vld [vmem:[%s165 + $0x3b8] sm:$0xff]
        %v460 = vld [vmem:[%s165 + $0x3c0] sm:$0xff]
        %v461 = vld [vmem:[%s165 + $0x3c8] sm:$0xff]
        %v462 = vld [vmem:[%s165 + $0x3d0] sm:$0xff]
        %v463 = vld [vmem:[%s165 + $0x3d8] sm:$0xff]
        %v464 = vld [vmem:[%s165 + $0x3e0] sm:$0xff]
        %v465 = vld [vmem:[%s165 + $0x3e8] sm:$0xff]
        %v466 = vld [vmem:[%s165 + $0x3f0] sm:$0xff]
        %v467 = vld [vmem:[%s165 + $0x3f8] sm:$0xff]
        %v468 = vld [vmem:[%s165 + $0x400] sm:$0xff]
        %v469 = vld [vmem:[%s165 + $0x408] sm:$0xff]
        %v470 = vld [vmem:[%s165 + $0x410] sm:$0xff]
        %v471 = vld [vmem:[%s165 + $0x418] sm:$0xff]
        %v472 = vld [vmem:[%s165 + $0x420] sm:$0xff]
        %v473 = vld [vmem:[%s165 + $0x428] sm:$0xff]
        %v474 = vld [vmem:[%s165 + $0x430] sm:$0xff]
        %v475 = vld [vmem:[%s165 + $0x438] sm:$0xff]
        %v476 = vld [vmem:[%s165 + $0x440] sm:$0xff]
        %v477 = vld [vmem:[%s165 + $0x448] sm:$0xff]
        %v478 = vld [vmem:[%s165 + $0x450] sm:$0xff]
        %v479 = vld [vmem:[%s165 + $0x458] sm:$0xff]
        %v480 = vld [vmem:[%s165 + $0x460] sm:$0xff]
        %v481 = vld [vmem:[%s165 + $0x468] sm:$0xff]
        %v482 = vld [vmem:[%s165 + $0x470] sm:$0xff]
        %v483 = vld [vmem:[%s165 + $0x478] sm:$0xff]
        %v484 = vld [vmem:[%s165 + $0x480] sm:$0xff]
        %v485 = vld [vmem:[%s165 + $0x488] sm:$0xff]
        %v486 = vld [vmem:[%s165 + $0x490] sm:$0xff]
        %v487 = vld [vmem:[%s165 + $0x498] sm:$0xff]
        %v488 = vld [vmem:[%s165 + $0x4a0] sm:$0xff]
        %v489 = vld [vmem:[%s165 + $0x4a8] sm:$0xff]
        %v490 = vld [vmem:[%s165 + $0x4b0] sm:$0xff]
        %v491 = vld [vmem:[%s165 + $0x4b8] sm:$0xff]
        %v492 = vld [vmem:[%s165 + $0x4c0] sm:$0xff]
        %v493 = vld [vmem:[%s165 + $0x4c8] sm:$0xff]
        %v494 = vld [vmem:[%s165 + $0x4d0] sm:$0xff]
        %v495 = vld [vmem:[%s165 + $0x4d8] sm:$0xff]
        %v496 = vld [vmem:[%s165 + $0x4e0] sm:$0xff]
        %v497 = vld [vmem:[%s165 + $0x4e8] sm:$0xff]
        %v498 = vld [vmem:[%s165 + $0x4f0] sm:$0xff]
        %v499 = vld [vmem:[%s165 + $0x4f8] sm:$0xff]
        %v500 = vld [vmem:[%s165 + $0x500] sm:$0xff]
        %v501 = vld [vmem:[%s165 + $0x508] sm:$0xff]
        %v502 = vld [vmem:[%s165 + $0x510] sm:$0xff]
        %v503 = vld [vmem:[%s165 + $0x518] sm:$0xff]
        %v504 = vld [vmem:[%s165 + $0x520] sm:$0xff]
        %v505 = vld [vmem:[%s165 + $0x528] sm:$0xff]
        %v506 = vld [vmem:[%s165 + $0x530] sm:$0xff]
        %v507 = vld [vmem:[%s165 + $0x538] sm:$0xff]
        %v508 = vld [vmem:[%s165 + $0x540] sm:$0xff]
        %v509 = vld [vmem:[%s165 + $0x548] sm:$0xff]
        %v510 = vld [vmem:[%s165 + $0x550] sm:$0xff]
        %v511 = vld [vmem:[%s165 + $0x558] sm:$0xff]
        %v512 = vld [vmem:[%s165 + $0x560] sm:$0xff]
        %v513 = vld [vmem:[%s165 + $0x568] sm:$0xff]
        %v514 = vld [vmem:[%s165 + $0x570] sm:$0xff]
        %v515 = vld [vmem:[%s165 + $0x578] sm:$0xff]
        %v516 = vld [vmem:[%s165 + $0x580] sm:$0xff]
        %v517 = vld [vmem:[%s165 + $0x588] sm:$0xff]
        %v518 = vld [vmem:[%s165 + $0x590] sm:$0xff]
        %v519 = vld [vmem:[%s165 + $0x598] sm:$0xff]
        %v520 = vld [vmem:[%s165 + $0x5a0] sm:$0xff]
        %v521 = vld [vmem:[%s165 + $0x5a8] sm:$0xff]
        %v522 = vld [vmem:[%s165 + $0x5b0] sm:$0xff]
        %v523 = vld [vmem:[%s165 + $0x5b8] sm:$0xff]
        %v524 = vld [vmem:[%s165 + $0x5c0] sm:$0xff]
        %v525 = vld [vmem:[%s165 + $0x5c8] sm:$0xff]
        %v526 = vld [vmem:[%s165 + $0x5d0] sm:$0xff]
        %v527 = vld [vmem:[%s165 + $0x5d8] sm:$0xff]
        %v528 = vld [vmem:[%s165 + $0x5e0] sm:$0xff]
        %v529 = vld [vmem:[%s165 + $0x5e8] sm:$0xff]
        %v530 = vld [vmem:[%s165 + $0x5f0] sm:$0xff]
        %v531 = vld [vmem:[%s165 + $0x5f8] sm:$0xff]
        %v532 = vld [vmem:[%s165 + $0x600] sm:$0xff]
        %v533 = vld [vmem:[%s165 + $0x608] sm:$0xff]
        %v534 = vld [vmem:[%s165 + $0x610] sm:$0xff]
        %v535 = vld [vmem:[%s165 + $0x618] sm:$0xff]
        %v536 = vld [vmem:[%s165 + $0x620] sm:$0xff]
        %v537 = vld [vmem:[%s165 + $0x628] sm:$0xff]
        %v538 = vld [vmem:[%s165 + $0x630] sm:$0xff]
        %v539 = vld [vmem:[%s165 + $0x638] sm:$0xff]
        %v540 = vld [vmem:[%s165 + $0x640] sm:$0xff]
        %v541 = vld [vmem:[%s165 + $0x648] sm:$0xff]
        %v542 = vld [vmem:[%s165 + $0x650] sm:$0xff]
        %v543 = vld [vmem:[%s165 + $0x658] sm:$0xff]
        %v544 = vld [vmem:[%s165 + $0x660] sm:$0xff]
        %v545 = vld [vmem:[%s165 + $0x668] sm:$0xff]
        %v546 = vld [vmem:[%s165 + $0x670] sm:$0xff]
        %v547 = vld [vmem:[%s165 + $0x678] sm:$0xff]
        %v548 = vld [vmem:[%s165 + $0x680] sm:$0xff]
        %v549 = vld [vmem:[%s165 + $0x688] sm:$0xff]
        %v550 = vld [vmem:[%s165 + $0x690] sm:$0xff]
        %v551 = vld [vmem:[%s165 + $0x698] sm:$0xff]
        %v552 = vld [vmem:[%s165 + $0x6a0] sm:$0xff]
        %v553 = vld [vmem:[%s165 + $0x6a8] sm:$0xff]
        %v554 = vld [vmem:[%s165 + $0x6b0] sm:$0xff]
        %v555 = vld [vmem:[%s165 + $0x6b8] sm:$0xff]
        %v556 = vld [vmem:[%s165 + $0x6c0] sm:$0xff]
        %v557 = vld [vmem:[%s165 + $0x6c8] sm:$0xff]
        %v558 = vld [vmem:[%s165 + $0x6d0] sm:$0xff]
        %v559 = vld [vmem:[%s165 + $0x6d8] sm:$0xff]
        %v560 = vld [vmem:[%s165 + $0x6e0] sm:$0xff]
        %v561 = vld [vmem:[%s165 + $0x6e8] sm:$0xff]
        %v562 = vld [vmem:[%s165 + $0x6f0] sm:$0xff]
        %v563 = vld [vmem:[%s165 + $0x6f8] sm:$0xff]
        %v564 = vld [vmem:[%s165 + $0x700] sm:$0xff]
        %v565 = vld [vmem:[%s165 + $0x708] sm:$0xff]
        %v566 = vld [vmem:[%s165 + $0x710] sm:$0xff]
        %v567 = vld [vmem:[%s165 + $0x718] sm:$0xff]
        %v568 = vld [vmem:[%s165 + $0x720] sm:$0xff]
        %v569 = vld [vmem:[%s165 + $0x728] sm:$0xff]
        %v570 = vld [vmem:[%s165 + $0x730] sm:$0xff]
        %v571 = vld [vmem:[%s165 + $0x738] sm:$0xff]
        %v572 = vld [vmem:[%s165 + $0x740] sm:$0xff]
        %v573 = vld [vmem:[%s165 + $0x748] sm:$0xff]
        %v574 = vld [vmem:[%s165 + $0x750] sm:$0xff]
        %v575 = vld [vmem:[%s165 + $0x758] sm:$0xff]
        %v576 = vld [vmem:[%s165 + $0x760] sm:$0xff]
        %v577 = vld [vmem:[%s165 + $0x768] sm:$0xff]
        %v578 = vld [vmem:[%s165 + $0x770] sm:$0xff]
        %v579 = vld [vmem:[%s165 + $0x778] sm:$0xff]
        %v580 = vld [vmem:[%s165 + $0x780] sm:$0xff]
        %v581 = vld [vmem:[%s165 + $0x788] sm:$0xff]
        %v582 = vld [vmem:[%s165 + $0x790] sm:$0xff]
        %v583 = vld [vmem:[%s165 + $0x798] sm:$0xff]
        %v584 = vld [vmem:[%s165 + $0x7a0] sm:$0xff]
        %v585 = vld [vmem:[%s165 + $0x7a8] sm:$0xff]
        %v586 = vld [vmem:[%s165 + $0x7b0] sm:$0xff]
        %v587 = vld [vmem:[%s165 + $0x7b8] sm:$0xff]
        %v588 = vld [vmem:[%s165 + $0x7c0] sm:$0xff]
        %v589 = vld [vmem:[%s165 + $0x7c8] sm:$0xff]
        %v590 = vld [vmem:[%s165 + $0x7d0] sm:$0xff]
        %v591 = vld [vmem:[%s165 + $0x7d8] sm:$0xff]
        %v592 = vld [vmem:[%s165 + $0x7e0] sm:$0xff]
        %v593 = vld [vmem:[%s165 + $0x7e8] sm:$0xff]
        %v594 = vld [vmem:[%s165 + $0x7f0] sm:$0xff]
        %v595 = vld [vmem:[%s165 + $0x7f8] sm:$0xff]
        %v596 = vld [vmem:[%s165 + $0x800] sm:$0xff]
        %v597 = vld [vmem:[%s165 + $0x808] sm:$0xff]
        %v598 = vld [vmem:[%s165 + $0x810] sm:$0xff]
        %v599 = vld [vmem:[%s165 + $0x818] sm:$0xff]
        %v600 = vld [vmem:[%s165 + $0x820] sm:$0xff]
        %v601 = vld [vmem:[%s165 + $0x828] sm:$0xff]
        %v602 = vld [vmem:[%s165 + $0x830] sm:$0xff]
        %v603 = vld [vmem:[%s165 + $0x838] sm:$0xff]
        %v604 = vld [vmem:[%s165 + $0x840] sm:$0xff]
        %v605 = vld [vmem:[%s165 + $0x848] sm:$0xff]
        %v606 = vld [vmem:[%s165 + $0x850] sm:$0xff]
        %v607 = vld [vmem:[%s165 + $0x858] sm:$0xff]
        %v608 = vld [vmem:[%s165 + $0x860] sm:$0xff]
        %v609 = vld [vmem:[%s165 + $0x868] sm:$0xff]
        %v610 = vld [vmem:[%s165 + $0x870] sm:$0xff]
        %v611 = vld [vmem:[%s165 + $0x878] sm:$0xff]
        %v612 = vld [vmem:[%s165 + $0x880] sm:$0xff]
        %v613 = vld [vmem:[%s165 + $0x888] sm:$0xff]
        %v614 = vld [vmem:[%s165 + $0x890] sm:$0xff]
        %v615 = vld [vmem:[%s165 + $0x898] sm:$0xff]
        %v616 = vld [vmem:[%s165 + $0x8a0] sm:$0xff]
        %v617 = vld [vmem:[%s165 + $0x8a8] sm:$0xff]
        %v618 = vld [vmem:[%s165 + $0x8b0] sm:$0xff]
        %v619 = vld [vmem:[%s165 + $0x8b8] sm:$0xff]
        %v620 = vld [vmem:[%s165 + $0x8c0] sm:$0xff]
        %v621 = vld [vmem:[%s165 + $0x8c8] sm:$0xff]
        %v622 = vld [vmem:[%s165 + $0x8d0] sm:$0xff]
        %v623 = vld [vmem:[%s165 + $0x8d8] sm:$0xff]
        %v624 = vld [vmem:[%s165 + $0x8e0] sm:$0xff]
        %v625 = vld [vmem:[%s165 + $0x8e8] sm:$0xff]
        %v626 = vld [vmem:[%s165 + $0x8f0] sm:$0xff]
        %v627 = vld [vmem:[%s165 + $0x8f8] sm:$0xff]
        %v628 = vld [vmem:[%s165 + $0x900] sm:$0xff]
        %v629 = vld [vmem:[%s165 + $0x908] sm:$0xff]
        %v630 = vld [vmem:[%s165 + $0x910] sm:$0xff]
        %v631 = vld [vmem:[%s165 + $0x918] sm:$0xff]
        %v632 = vld [vmem:[%s165 + $0x920] sm:$0xff]
        %v633 = vld [vmem:[%s165 + $0x928] sm:$0xff]
        %v634 = vld [vmem:[%s165 + $0x930] sm:$0xff]
        %v635 = vld [vmem:[%s165 + $0x938] sm:$0xff]
        %v636 = vld [vmem:[%s165 + $0x940] sm:$0xff]
        %v637 = vld [vmem:[%s165 + $0x948] sm:$0xff]
        %v638 = vld [vmem:[%s165 + $0x950] sm:$0xff]
        %v639 = vld [vmem:[%s165 + $0x958] sm:$0xff]
        %v640 = vld [vmem:[%s165 + $0x960] sm:$0xff]
        %v641 = vld [vmem:[%s165 + $0x968] sm:$0xff]
        %v642 = vld [vmem:[%s165 + $0x970] sm:$0xff]
        %v643 = vld [vmem:[%s165 + $0x978] sm:$0xff]
        %v644 = vld [vmem:[%s165 + $0x980] sm:$0xff]
        %v645 = vld [vmem:[%s165 + $0x988] sm:$0xff]
        %v646 = vld [vmem:[%s165 + $0x990] sm:$0xff]
        %v647 = vld [vmem:[%s165 + $0x998] sm:$0xff]
        %v648 = vld [vmem:[%s165 + $0x9a0] sm:$0xff]
        %v649 = vld [vmem:[%s165 + $0x9a8] sm:$0xff]
        %v650 = vld [vmem:[%s165 + $0x9b0] sm:$0xff]
        %v651 = vld [vmem:[%s165 + $0x9b8] sm:$0xff]
        %v652 = vld [vmem:[%s165 + $0x9c0] sm:$0xff]
        %v653 = vld [vmem:[%s165 + $0x9c8] sm:$0xff]
        %v654 = vld [vmem:[%s165 + $0x9d0] sm:$0xff]
        %v655 = vld [vmem:[%s165 + $0x9d8] sm:$0xff]
        %v656 = vld [vmem:[%s165 + $0x9e0] sm:$0xff]
        %v657 = vld [vmem:[%s165 + $0x9e8] sm:$0xff]
        %v658 = vld [vmem:[%s165 + $0x9f0] sm:$0xff]
        %v659 = vld [vmem:[%s165 + $0x9f8] sm:$0xff]
        %v660 = vld [vmem:[%s165 + $0xa00] sm:$0xff]
        %v661 = vld [vmem:[%s165 + $0xa08] sm:$0xff]
        %v662 = vld [vmem:[%s165 + $0xa10] sm:$0xff]
        %v663 = vld [vmem:[%s165 + $0xa18] sm:$0xff]
        %v664 = vld [vmem:[%s165 + $0xa20] sm:$0xff]
        %v665 = vld [vmem:[%s165 + $0xa28] sm:$0xff]
        %v666 = vld [vmem:[%s165 + $0xa30] sm:$0xff]
        %v667 = vld [vmem:[%s165 + $0xa38] sm:$0xff]
        %v668 = vld [vmem:[%s165 + $0xa40] sm:$0xff]
        %v669 = vld [vmem:[%s165 + $0xa48] sm:$0xff]
        %v670 = vld [vmem:[%s165 + $0xa50] sm:$0xff]
        %v671 = vld [vmem:[%s165 + $0xa58] sm:$0xff]
        %v672 = vld [vmem:[%s165 + $0xa60] sm:$0xff]
        %v673 = vld [vmem:[%s165 + $0xa68] sm:$0xff]
        %v674 = vld [vmem:[%s165 + $0xa70] sm:$0xff]
        %v675 = vld [vmem:[%s165 + $0xa78] sm:$0xff]
        %v676 = vld [vmem:[%s165 + $0xa80] sm:$0xff]
        %v677 = vld [vmem:[%s165 + $0xa88] sm:$0xff]
        %v678 = vld [vmem:[%s165 + $0xa90] sm:$0xff]
        %v679 = vld [vmem:[%s165 + $0xa98] sm:$0xff]
        %v680 = vld [vmem:[%s165 + $0xaa0] sm:$0xff]
        %v681 = vld [vmem:[%s165 + $0xaa8] sm:$0xff]
        %v682 = vld [vmem:[%s165 + $0xab0] sm:$0xff]
        %v683 = vld [vmem:[%s165 + $0xab8] sm:$0xff]
        %v684 = vld [vmem:[%s165 + $0xac0] sm:$0xff]
        %v685 = vld [vmem:[%s165 + $0xac8] sm:$0xff]
        %v686 = vld [vmem:[%s165 + $0xad0] sm:$0xff]
        %v687 = vld [vmem:[%s165 + $0xad8] sm:$0xff]
        %v688 = vld [vmem:[%s165 + $0xae0] sm:$0xff]
        %v689 = vld [vmem:[%s165 + $0xae8] sm:$0xff]
        %v690 = vld [vmem:[%s165 + $0xaf0] sm:$0xff]
        %v691 = vld [vmem:[%s165 + $0xaf8] sm:$0xff]
        %v692 = vld [vmem:[%s165 + $0xb00] sm:$0xff]
        %v693 = vld [vmem:[%s165 + $0xb08] sm:$0xff]
        %v694 = vld [vmem:[%s165 + $0xb10] sm:$0xff]
        %v695 = vld [vmem:[%s165 + $0xb18] sm:$0xff]
        %v696 = vld [vmem:[%s165 + $0xb20] sm:$0xff]
        %v697 = vld [vmem:[%s165 + $0xb28] sm:$0xff]
        %v698 = vld [vmem:[%s165 + $0xb30] sm:$0xff]
        %v699 = vld [vmem:[%s165 + $0xb38] sm:$0xff]
        %v700 = vld [vmem:[%s165 + $0xb40] sm:$0xff]
        %v701 = vld [vmem:[%s165 + $0xb48] sm:$0xff]
        %v702 = vld [vmem:[%s165 + $0xb50] sm:$0xff]
        %v703 = vld [vmem:[%s165 + $0xb58] sm:$0xff]
        %v704 = vld [vmem:[%s165 + $0xb60] sm:$0xff]
        %v705 = vld [vmem:[%s165 + $0xb68] sm:$0xff]
        %v706 = vld [vmem:[%s165 + $0xb70] sm:$0xff]
        %v707 = vld [vmem:[%s165 + $0xb78] sm:$0xff]
        %v708 = vld [vmem:[%s165 + $0xb80] sm:$0xff]
        %v709 = vld [vmem:[%s165 + $0xb88] sm:$0xff]
        %v710 = vld [vmem:[%s165 + $0xb90] sm:$0xff]
        %v711 = vld [vmem:[%s165 + $0xb98] sm:$0xff]
        %v712 = vld [vmem:[%s165 + $0xba0] sm:$0xff]
        %v713 = vld [vmem:[%s165 + $0xba8] sm:$0xff]
        %v714 = vld [vmem:[%s165 + $0xbb0] sm:$0xff]
        %v715 = vld [vmem:[%s165 + $0xbb8] sm:$0xff]
        %v716 = vld [vmem:[%s165 + $0xbc0] sm:$0xff]
        %v717 = vld [vmem:[%s165 + $0xbc8] sm:$0xff]
        %v718 = vld [vmem:[%s165 + $0xbd0] sm:$0xff]
        %v719 = vld [vmem:[%s165 + $0xbd8] sm:$0xff]
        %v720 = vld [vmem:[%s165 + $0xbe0] sm:$0xff]
        %v721 = vld [vmem:[%s165 + $0xbe8] sm:$0xff]
        %v722 = vld [vmem:[%s165 + $0xbf0] sm:$0xff]
        %v723 = vld [vmem:[%s165 + $0xbf8] sm:$0xff]
        %v724 = vld [vmem:[%s165 + $0xc00] sm:$0xff]
        %v725 = vld [vmem:[%s165 + $0xc08] sm:$0xff]
        %v726 = vld [vmem:[%s165 + $0xc10] sm:$0xff]
        %v727 = vld [vmem:[%s165 + $0xc18] sm:$0xff]
        %v728 = vld [vmem:[%s165 + $0xc20] sm:$0xff]
        %v729 = vld [vmem:[%s165 + $0xc28] sm:$0xff]
        %v730 = vld [vmem:[%s165 + $0xc30] sm:$0xff]
        %v731 = vld [vmem:[%s165 + $0xc38] sm:$0xff]
        %v732 = vld [vmem:[%s165 + $0xc40] sm:$0xff]
        %v733 = vld [vmem:[%s165 + $0xc48] sm:$0xff]
        %v734 = vld [vmem:[%s165 + $0xc50] sm:$0xff]
        %v735 = vld [vmem:[%s165 + $0xc58] sm:$0xff]
        %v736 = vld [vmem:[%s165 + $0xc60] sm:$0xff]
        %v737 = vld [vmem:[%s165 + $0xc68] sm:$0xff]
        %v738 = vld [vmem:[%s165 + $0xc70] sm:$0xff]
        %v739 = vld [vmem:[%s165 + $0xc78] sm:$0xff]
        %v740 = vld [vmem:[%s165 + $0xc80] sm:$0xff]
        %v741 = vld [vmem:[%s165 + $0xc88] sm:$0xff]
        %v742 = vld [vmem:[%s165 + $0xc90] sm:$0xff]
        %v743 = vld [vmem:[%s165 + $0xc98] sm:$0xff]
        %v744 = vld [vmem:[%s165 + $0xca0] sm:$0xff]
        %v745 = vld [vmem:[%s165 + $0xca8] sm:$0xff]
        %v746 = vld [vmem:[%s165 + $0xcb0] sm:$0xff]
        %v747 = vld [vmem:[%s165 + $0xcb8] sm:$0xff]
        %v748 = vld [vmem:[%s165 + $0xcc0] sm:$0xff]
        %v749 = vld [vmem:[%s165 + $0xcc8] sm:$0xff]
        %v750 = vld [vmem:[%s165 + $0xcd0] sm:$0xff]
        %v751 = vld [vmem:[%s165 + $0xcd8] sm:$0xff]
        %v752 = vld [vmem:[%s165 + $0xce0] sm:$0xff]
        %v753 = vld [vmem:[%s165 + $0xce8] sm:$0xff]
        %v754 = vld [vmem:[%s165 + $0xcf0] sm:$0xff]
        %v755 = vld [vmem:[%s165 + $0xcf8] sm:$0xff]
        %v756 = vld [vmem:[%s165 + $0xd00] sm:$0xff]
        %v757 = vld [vmem:[%s165 + $0xd08] sm:$0xff]
        %v758 = vld [vmem:[%s165 + $0xd10] sm:$0xff]
        %v759 = vld [vmem:[%s165 + $0xd18] sm:$0xff]
        %v760 = vld [vmem:[%s165 + $0xd20] sm:$0xff]
        %v761 = vld [vmem:[%s165 + $0xd28] sm:$0xff]
        %v762 = vld [vmem:[%s165 + $0xd30] sm:$0xff]
        %v763 = vld [vmem:[%s165 + $0xd38] sm:$0xff]
        %v764 = vld [vmem:[%s165 + $0xd40] sm:$0xff]
        %v765 = vld [vmem:[%s165 + $0xd48] sm:$0xff]
        %v766 = vld [vmem:[%s165 + $0xd50] sm:$0xff]
        %v767 = vld [vmem:[%s165 + $0xd58] sm:$0xff]
        %v768 = vld [vmem:[%s165 + $0xd60] sm:$0xff]
        %v769 = vld [vmem:[%s165 + $0xd68] sm:$0xff]
        %v770 = vld [vmem:[%s165 + $0xd70] sm:$0xff]
        %v771 = vld [vmem:[%s165 + $0xd78] sm:$0xff]
        %772 = vmatpush.msra.mxu0 %v307
        %773 = vmatpush.msra.mxu0 %v306
        %774 = vmatpush.msra.mxu0 %v305
        %775 = vmatpush.msra.mxu0 %v304
        %776 = vmatpush.msra.mxu0 %v303
        %777 = vmatpush.msra.mxu0 %v302
        %778 = vmatpush.msra.mxu0 %v301
        %779 = vmatpush.msra.mxu0 %v300
        %780 = vmatpush.msra.mxu0 %v299
        %781 = vmatpush.msra.mxu0 %v298
        %782 = vmatpush.msra.mxu0 %v297
        %783 = vmatpush.msra.mxu0 %v296
        %784 = vmatpush.msra.mxu0 %v295
        %785 = vmatpush.msra.mxu0 %v294
        %786 = vmatpush.msra.mxu0 %v293
        %787 = vmatpush.msra.mxu0 %v292
        %788 = vmatmul.f32.gmra.mxu0 %v340
        %v789 = vpop.f32.mrf.mxu0
        %v790 = vadd.f32 0.0, %v789
        %791 = vmatmul.f32.gmra.mxu0 %v343
        %v792 = vpop.f32.mrf.mxu0
        %v793 = vadd.f32 0.0, %v792
        %794 = vmatmul.f32.gmra.mxu0 %v346
        %v795 = vpop.f32.mrf.mxu0
        %v796 = vadd.f32 0.0, %v795
        %797 = vmatmul.f32.gmra.mxu0 %v349
        %v798 = vpop.f32.mrf.mxu0
        %v799 = vadd.f32 0.0, %v798
        %800 = vmatmul.f32.gmra.mxu0 %v352
        %v801 = vpop.f32.mrf.mxu0
        %v802 = vadd.f32 0.0, %v801
        %803 = vmatmul.f32.gmra.mxu0 %v355
        %v804 = vpop.f32.mrf.mxu0
        %v805 = vadd.f32 0.0, %v804
        %806 = vmatmul.f32.gmra.mxu0 %v358
        %v807 = vpop.f32.mrf.mxu0
        %v808 = vadd.f32 0.0, %v807
        %809 = vmatmul.f32.gmra.mxu0 %v361
        %v810 = vpop.f32.mrf.mxu0
        %v811 = vadd.f32 0.0, %v810
        %812 = vmatmul.f32.gmra.mxu0 %v364
        %v813 = vpop.f32.mrf.mxu0
        %v814 = vadd.f32 0.0, %v813
        %815 = vmatmul.f32.gmra.mxu0 %v367
        %v816 = vpop.f32.mrf.mxu0
        %v817 = vadd.f32 0.0, %v816
        %818 = vmatmul.f32.gmra.mxu0 %v370
        %v819 = vpop.f32.mrf.mxu0
        %v820 = vadd.f32 0.0, %v819
        %821 = vmatmul.f32.gmra.mxu0 %v373
        %v822 = vpop.f32.mrf.mxu0
        %v823 = vadd.f32 0.0, %v822
        %824 = vmatmul.f32.gmra.mxu0 %v376
        %v825 = vpop.f32.mrf.mxu0
        %v826 = vadd.f32 0.0, %v825
        %827 = vmatmul.f32.gmra.mxu0 %v379
        %v828 = vpop.f32.mrf.mxu0
        %v829 = vadd.f32 0.0, %v828
        %830 = vmatmul.f32.gmra.mxu0 %v382
        %v831 = vpop.f32.mrf.mxu0
        %v832 = vadd.f32 0.0, %v831
        %833 = vmatmul.f32.gmra.mxu0 %v385
        %v834 = vpop.f32.mrf.mxu0
        %v835 = vadd.f32 0.0, %v834
        %836 = vmatmul.f32.gmra.mxu0 %v388
        %v837 = vpop.f32.mrf.mxu0
        %v838 = vadd.f32 0.0, %v837
        %839 = vmatmul.f32.gmra.mxu0 %v391
        %v840 = vpop.f32.mrf.mxu0
        %v841 = vadd.f32 0.0, %v840
        %842 = vmatmul.f32.gmra.mxu0 %v394
        %v843 = vpop.f32.mrf.mxu0
        %v844 = vadd.f32 0.0, %v843
        %845 = vmatmul.f32.gmra.mxu0 %v397
        %v846 = vpop.f32.mrf.mxu0
        %v847 = vadd.f32 0.0, %v846
        %848 = vmatmul.f32.gmra.mxu0 %v400
        %v849 = vpop.f32.mrf.mxu0
        %v850 = vadd.f32 0.0, %v849
        %851 = vmatmul.f32.gmra.mxu0 %v403
        %v852 = vpop.f32.mrf.mxu0
        %v853 = vadd.f32 0.0, %v852
        %854 = vmatmul.f32.gmra.mxu0 %v406
        %v855 = vpop.f32.mrf.mxu0
        %v856 = vadd.f32 0.0, %v855
        %857 = vmatmul.f32.gmra.mxu0 %v409
        %v858 = vpop.f32.mrf.mxu0
        %v859 = vadd.f32 0.0, %v858
        %860 = vmatmul.f32.gmra.mxu0 %v412
        %v861 = vpop.f32.mrf.mxu0
        %v862 = vadd.f32 0.0, %v861
        %863 = vmatmul.f32.gmra.mxu0 %v415
        %v864 = vpop.f32.mrf.mxu0
        %v865 = vadd.f32 0.0, %v864
        %866 = vmatmul.f32.gmra.mxu0 %v418
        %v867 = vpop.f32.mrf.mxu0
        %v868 = vadd.f32 0.0, %v867
        %869 = vmatmul.f32.gmra.mxu0 %v421
        %v870 = vpop.f32.mrf.mxu0
        %v871 = vadd.f32 0.0, %v870
        %872 = vmatmul.f32.gmra.mxu0 %v424
        %v873 = vpop.f32.mrf.mxu0
        %v874 = vadd.f32 0.0, %v873
        %875 = vmatmul.f32.gmra.mxu0 %v427
        %v876 = vpop.f32.mrf.mxu0
        %v877 = vadd.f32 0.0, %v876
        %878 = vmatmul.f32.gmra.mxu0 %v430
        %v879 = vpop.f32.mrf.mxu0
        %v880 = vadd.f32 0.0, %v879
        %881 = vmatmul.f32.gmra.mxu0 %v433
        %v882 = vpop.f32.mrf.mxu0
        %v883 = vadd.f32 0.0, %v882
        %884 = vmatmul.f32.gmra.mxu0 %v436
        %v885 = vpop.f32.mrf.mxu0
        %v886 = vadd.f32 0.0, %v885
        %887 = vmatmul.f32.gmra.mxu0 %v439
        %v888 = vpop.f32.mrf.mxu0
        %v889 = vadd.f32 0.0, %v888
        %890 = vmatmul.f32.gmra.mxu0 %v442
        %v891 = vpop.f32.mrf.mxu0
        %v892 = vadd.f32 0.0, %v891
        %893 = vmatmul.f32.gmra.mxu0 %v445
        %v894 = vpop.f32.mrf.mxu0
        %v895 = vadd.f32 0.0, %v894
        %896 = vmatmul.f32.gmra.mxu0 %v448
        %v897 = vpop.f32.mrf.mxu0
        %v898 = vadd.f32 0.0, %v897
        %899 = vmatmul.f32.gmra.mxu0 %v451
        %v900 = vpop.f32.mrf.mxu0
        %v901 = vadd.f32 0.0, %v900
        %902 = vmatmul.f32.gmra.mxu0 %v454
        %v903 = vpop.f32.mrf.mxu0
        %v904 = vadd.f32 0.0, %v903
        %905 = vmatmul.f32.gmra.mxu0 %v457
        %v906 = vpop.f32.mrf.mxu0
        %v907 = vadd.f32 0.0, %v906
        %908 = vmatmul.f32.gmra.mxu0 %v460
        %v909 = vpop.f32.mrf.mxu0
        %v910 = vadd.f32 0.0, %v909
        %911 = vmatmul.f32.gmra.mxu0 %v463
        %v912 = vpop.f32.mrf.mxu0
        %v913 = vadd.f32 0.0, %v912
        %914 = vmatmul.f32.gmra.mxu0 %v466
        %v915 = vpop.f32.mrf.mxu0
        %v916 = vadd.f32 0.0, %v915
        %917 = vmatmul.f32.gmra.mxu0 %v469
        %v918 = vpop.f32.mrf.mxu0
        %v919 = vadd.f32 0.0, %v918
        %920 = vmatmul.f32.gmra.mxu0 %v472
        %v921 = vpop.f32.mrf.mxu0
        %v922 = vadd.f32 0.0, %v921
        %923 = vmatmul.f32.gmra.mxu0 %v475
        %v924 = vpop.f32.mrf.mxu0
        %v925 = vadd.f32 0.0, %v924
        %926 = vmatmul.f32.gmra.mxu0 %v478
        %v927 = vpop.f32.mrf.mxu0
        %v928 = vadd.f32 0.0, %v927
        %929 = vmatmul.f32.gmra.mxu0 %v481
        %v930 = vpop.f32.mrf.mxu0
        %v931 = vadd.f32 0.0, %v930
        %932 = vmatmul.f32.gmra.mxu0 %v484
        %v933 = vpop.f32.mrf.mxu0
        %v934 = vadd.f32 0.0, %v933
        %935 = vmatmul.f32.gmra.mxu0 %v487
        %v936 = vpop.f32.mrf.mxu0
        %v937 = vadd.f32 0.0, %v936
        %938 = vmatmul.f32.gmra.mxu0 %v490
        %v939 = vpop.f32.mrf.mxu0
        %v940 = vadd.f32 0.0, %v939
        %941 = vmatmul.f32.gmra.mxu0 %v493
        %v942 = vpop.f32.mrf.mxu0
        %v943 = vadd.f32 0.0, %v942
        %944 = vmatmul.f32.gmra.mxu0 %v496
        %v945 = vpop.f32.mrf.mxu0
        %v946 = vadd.f32 0.0, %v945
        %947 = vmatmul.f32.gmra.mxu0 %v499
        %v948 = vpop.f32.mrf.mxu0
        %v949 = vadd.f32 0.0, %v948
        %950 = vmatmul.f32.gmra.mxu0 %v502
        %v951 = vpop.f32.mrf.mxu0
        %v952 = vadd.f32 0.0, %v951
        %953 = vmatmul.f32.gmra.mxu0 %v505
        %v954 = vpop.f32.mrf.mxu0
        %v955 = vadd.f32 0.0, %v954
        %956 = vmatmul.f32.gmra.mxu0 %v508
        %v957 = vpop.f32.mrf.mxu0
        %v958 = vadd.f32 0.0, %v957
        %959 = vmatmul.f32.gmra.mxu0 %v511
        %v960 = vpop.f32.mrf.mxu0
        %v961 = vadd.f32 0.0, %v960
        %962 = vmatmul.f32.gmra.mxu0 %v514
        %v963 = vpop.f32.mrf.mxu0
        %v964 = vadd.f32 0.0, %v963
        %965 = vmatmul.f32.gmra.mxu0 %v517
        %v966 = vpop.f32.mrf.mxu0
        %v967 = vadd.f32 0.0, %v966
        %968 = vmatmul.f32.gmra.mxu0 %v520
        %v969 = vpop.f32.mrf.mxu0
        %v970 = vadd.f32 0.0, %v969
        %971 = vmatmul.f32.gmra.mxu0 %v523
        %v972 = vpop.f32.mrf.mxu0
        %v973 = vadd.f32 0.0, %v972
        %974 = vmatmul.f32.gmra.mxu0 %v526
        %v975 = vpop.f32.mrf.mxu0
        %v976 = vadd.f32 0.0, %v975
        %977 = vmatmul.f32.gmra.mxu0 %v529
        %v978 = vpop.f32.mrf.mxu0
        %v979 = vadd.f32 0.0, %v978
        %980 = vmatmul.f32.gmra.mxu0 %v532
        %v981 = vpop.f32.mrf.mxu0
        %v982 = vadd.f32 0.0, %v981
        %983 = vmatmul.f32.gmra.mxu0 %v535
        %v984 = vpop.f32.mrf.mxu0
        %v985 = vadd.f32 0.0, %v984
        %986 = vmatmul.f32.gmra.mxu0 %v538
        %v987 = vpop.f32.mrf.mxu0
        %v988 = vadd.f32 0.0, %v987
        %989 = vmatmul.f32.gmra.mxu0 %v541
        %v990 = vpop.f32.mrf.mxu0
        %v991 = vadd.f32 0.0, %v990
        %992 = vmatmul.f32.gmra.mxu0 %v544
        %v993 = vpop.f32.mrf.mxu0
        %v994 = vadd.f32 0.0, %v993
        %995 = vmatmul.f32.gmra.mxu0 %v547
        %v996 = vpop.f32.mrf.mxu0
        %v997 = vadd.f32 0.0, %v996
        %998 = vmatmul.f32.gmra.mxu0 %v550
        %v999 = vpop.f32.mrf.mxu0
        %v1000 = vadd.f32 0.0, %v999
        %1001 = vmatmul.f32.gmra.mxu0 %v553
        %v1002 = vpop.f32.mrf.mxu0
        %v1003 = vadd.f32 0.0, %v1002
        %1004 = vmatmul.f32.gmra.mxu0 %v556
        %v1005 = vpop.f32.mrf.mxu0
        %v1006 = vadd.f32 0.0, %v1005
        %1007 = vmatmul.f32.gmra.mxu0 %v559
        %v1008 = vpop.f32.mrf.mxu0
        %v1009 = vadd.f32 0.0, %v1008
        %1010 = vmatmul.f32.gmra.mxu0 %v562
        %v1011 = vpop.f32.mrf.mxu0
        %v1012 = vadd.f32 0.0, %v1011
        %1013 = vmatmul.f32.gmra.mxu0 %v565
        %v1014 = vpop.f32.mrf.mxu0
        %v1015 = vadd.f32 0.0, %v1014
        %1016 = vmatmul.f32.gmra.mxu0 %v568
        %v1017 = vpop.f32.mrf.mxu0
        %v1018 = vadd.f32 0.0, %v1017
        %1019 = vmatmul.f32.gmra.mxu0 %v571
        %v1020 = vpop.f32.mrf.mxu0
        %v1021 = vadd.f32 0.0, %v1020
        %1022 = vmatmul.f32.gmra.mxu0 %v574
        %v1023 = vpop.f32.mrf.mxu0
        %v1024 = vadd.f32 0.0, %v1023
        %1025 = vmatmul.f32.gmra.mxu0 %v577
        %v1026 = vpop.f32.mrf.mxu0
        %v1027 = vadd.f32 0.0, %v1026
        %1028 = vmatmul.f32.gmra.mxu0 %v580
        %v1029 = vpop.f32.mrf.mxu0
        %v1030 = vadd.f32 0.0, %v1029
        %1031 = vmatmul.f32.gmra.mxu0 %v583
        %v1032 = vpop.f32.mrf.mxu0
        %v1033 = vadd.f32 0.0, %v1032
        %1034 = vmatmul.f32.gmra.mxu0 %v586
        %v1035 = vpop.f32.mrf.mxu0
        %v1036 = vadd.f32 0.0, %v1035
        %1037 = vmatmul.f32.gmra.mxu0 %v589
        %v1038 = vpop.f32.mrf.mxu0
        %v1039 = vadd.f32 0.0, %v1038
        %1040 = vmatmul.f32.gmra.mxu0 %v592
        %v1041 = vpop.f32.mrf.mxu0
        %v1042 = vadd.f32 0.0, %v1041
        %1043 = vmatmul.f32.gmra.mxu0 %v595
        %v1044 = vpop.f32.mrf.mxu0
        %v1045 = vadd.f32 0.0, %v1044
        %1046 = vmatmul.f32.gmra.mxu0 %v598
        %v1047 = vpop.f32.mrf.mxu0
        %v1048 = vadd.f32 0.0, %v1047
        %1049 = vmatmul.f32.gmra.mxu0 %v601
        %v1050 = vpop.f32.mrf.mxu0
        %v1051 = vadd.f32 0.0, %v1050
        %1052 = vmatmul.f32.gmra.mxu0 %v604
        %v1053 = vpop.f32.mrf.mxu0
        %v1054 = vadd.f32 0.0, %v1053
        %1055 = vmatmul.f32.gmra.mxu0 %v607
        %v1056 = vpop.f32.mrf.mxu0
        %v1057 = vadd.f32 0.0, %v1056
        %1058 = vmatmul.f32.gmra.mxu0 %v610
        %v1059 = vpop.f32.mrf.mxu0
        %v1060 = vadd.f32 0.0, %v1059
        %1061 = vmatmul.f32.gmra.mxu0 %v613
        %v1062 = vpop.f32.mrf.mxu0
        %v1063 = vadd.f32 0.0, %v1062
        %1064 = vmatmul.f32.gmra.mxu0 %v616
        %v1065 = vpop.f32.mrf.mxu0
        %v1066 = vadd.f32 0.0, %v1065
        %1067 = vmatmul.f32.gmra.mxu0 %v619
        %v1068 = vpop.f32.mrf.mxu0
        %v1069 = vadd.f32 0.0, %v1068
        %1070 = vmatmul.f32.gmra.mxu0 %v622
        %v1071 = vpop.f32.mrf.mxu0
        %v1072 = vadd.f32 0.0, %v1071
        %1073 = vmatmul.f32.gmra.mxu0 %v625
        %v1074 = vpop.f32.mrf.mxu0
        %v1075 = vadd.f32 0.0, %v1074
        %1076 = vmatmul.f32.gmra.mxu0 %v628
        %v1077 = vpop.f32.mrf.mxu0
        %v1078 = vadd.f32 0.0, %v1077
        %1079 = vmatmul.f32.gmra.mxu0 %v631
        %v1080 = vpop.f32.mrf.mxu0
        %v1081 = vadd.f32 0.0, %v1080
        %1082 = vmatmul.f32.gmra.mxu0 %v634
        %v1083 = vpop.f32.mrf.mxu0
        %v1084 = vadd.f32 0.0, %v1083
        %1085 = vmatmul.f32.gmra.mxu0 %v637
        %v1086 = vpop.f32.mrf.mxu0
        %v1087 = vadd.f32 0.0, %v1086
        %1088 = vmatmul.f32.gmra.mxu0 %v640
        %v1089 = vpop.f32.mrf.mxu0
        %v1090 = vadd.f32 0.0, %v1089
        %1091 = vmatmul.f32.gmra.mxu0 %v643
        %v1092 = vpop.f32.mrf.mxu0
        %v1093 = vadd.f32 0.0, %v1092
        %1094 = vmatmul.f32.gmra.mxu0 %v646
        %v1095 = vpop.f32.mrf.mxu0
        %v1096 = vadd.f32 0.0, %v1095
        %1097 = vmatmul.f32.gmra.mxu0 %v649
        %v1098 = vpop.f32.mrf.mxu0
        %v1099 = vadd.f32 0.0, %v1098
        %1100 = vmatmul.f32.gmra.mxu0 %v652
        %v1101 = vpop.f32.mrf.mxu0
        %v1102 = vadd.f32 0.0, %v1101
        %1103 = vmatmul.f32.gmra.mxu0 %v655
        %v1104 = vpop.f32.mrf.mxu0
        %v1105 = vadd.f32 0.0, %v1104
        %1106 = vmatmul.f32.gmra.mxu0 %v658
        %v1107 = vpop.f32.mrf.mxu0
        %v1108 = vadd.f32 0.0, %v1107
        %1109 = vmatmul.f32.gmra.mxu0 %v661
        %v1110 = vpop.f32.mrf.mxu0
        %v1111 = vadd.f32 0.0, %v1110
        %1112 = vmatmul.f32.gmra.mxu0 %v664
        %v1113 = vpop.f32.mrf.mxu0
        %v1114 = vadd.f32 0.0, %v1113
        %1115 = vmatmul.f32.gmra.mxu0 %v667
        %v1116 = vpop.f32.mrf.mxu0
        %v1117 = vadd.f32 0.0, %v1116
        %1118 = vmatmul.f32.gmra.mxu0 %v670
        %v1119 = vpop.f32.mrf.mxu0
        %v1120 = vadd.f32 0.0, %v1119
        %1121 = vmatmul.f32.gmra.mxu0 %v673
        %v1122 = vpop.f32.mrf.mxu0
        %v1123 = vadd.f32 0.0, %v1122
        %1124 = vmatmul.f32.gmra.mxu0 %v676
        %v1125 = vpop.f32.mrf.mxu0
        %v1126 = vadd.f32 0.0, %v1125
        %1127 = vmatmul.f32.gmra.mxu0 %v679
        %v1128 = vpop.f32.mrf.mxu0
        %v1129 = vadd.f32 0.0, %v1128
        %1130 = vmatmul.f32.gmra.mxu0 %v682
        %v1131 = vpop.f32.mrf.mxu0
        %v1132 = vadd.f32 0.0, %v1131
        %1133 = vmatmul.f32.gmra.mxu0 %v685
        %v1134 = vpop.f32.mrf.mxu0
        %v1135 = vadd.f32 0.0, %v1134
        %1136 = vmatmul.f32.gmra.mxu0 %v688
        %v1137 = vpop.f32.mrf.mxu0
        %v1138 = vadd.f32 0.0, %v1137
        %1139 = vmatmul.f32.gmra.mxu0 %v691
        %v1140 = vpop.f32.mrf.mxu0
        %v1141 = vadd.f32 0.0, %v1140
        %1142 = vmatmul.f32.gmra.mxu0 %v694
        %v1143 = vpop.f32.mrf.mxu0
        %v1144 = vadd.f32 0.0, %v1143
        %1145 = vmatmul.f32.gmra.mxu0 %v697
        %v1146 = vpop.f32.mrf.mxu0
        %v1147 = vadd.f32 0.0, %v1146
        %1148 = vmatmul.f32.gmra.mxu0 %v700
        %v1149 = vpop.f32.mrf.mxu0
        %v1150 = vadd.f32 0.0, %v1149
        %1151 = vmatmul.f32.gmra.mxu0 %v703
        %v1152 = vpop.f32.mrf.mxu0
        %v1153 = vadd.f32 0.0, %v1152
        %1154 = vmatmul.f32.gmra.mxu0 %v706
        %v1155 = vpop.f32.mrf.mxu0
        %v1156 = vadd.f32 0.0, %v1155
        %1157 = vmatmul.f32.gmra.mxu0 %v709
        %v1158 = vpop.f32.mrf.mxu0
        %v1159 = vadd.f32 0.0, %v1158
        %1160 = vmatmul.f32.gmra.mxu0 %v712
        %v1161 = vpop.f32.mrf.mxu0
        %v1162 = vadd.f32 0.0, %v1161
        %1163 = vmatmul.f32.gmra.mxu0 %v715
        %v1164 = vpop.f32.mrf.mxu0
        %v1165 = vadd.f32 0.0, %v1164
        %1166 = vmatmul.f32.gmra.mxu0 %v718
        %v1167 = vpop.f32.mrf.mxu0
        %v1168 = vadd.f32 0.0, %v1167
        %1169 = vmatmul.f32.gmra.mxu0 %v721
        %v1170 = vpop.f32.mrf.mxu0
        %v1171 = vadd.f32 0.0, %v1170
        %1172 = vmatmul.f32.gmra.mxu0 %v724
        %v1173 = vpop.f32.mrf.mxu0
        %v1174 = vadd.f32 0.0, %v1173
        %1175 = vmatmul.f32.gmra.mxu0 %v727
        %v1176 = vpop.f32.mrf.mxu0
        %v1177 = vadd.f32 0.0, %v1176
        %1178 = vmatmul.f32.gmra.mxu0 %v730
        %v1179 = vpop.f32.mrf.mxu0
        %v1180 = vadd.f32 0.0, %v1179
        %1181 = vmatmul.f32.gmra.mxu0 %v733
        %v1182 = vpop.f32.mrf.mxu0
        %v1183 = vadd.f32 0.0, %v1182
        %1184 = vmatmul.f32.gmra.mxu0 %v736
        %v1185 = vpop.f32.mrf.mxu0
        %v1186 = vadd.f32 0.0, %v1185
        %1187 = vmatmul.f32.gmra.mxu0 %v739
        %v1188 = vpop.f32.mrf.mxu0
        %v1189 = vadd.f32 0.0, %v1188
        %1190 = vmatmul.f32.gmra.mxu0 %v742
        %v1191 = vpop.f32.mrf.mxu0
        %v1192 = vadd.f32 0.0, %v1191
        %1193 = vmatmul.f32.gmra.mxu0 %v745
        %v1194 = vpop.f32.mrf.mxu0
        %v1195 = vadd.f32 0.0, %v1194
        %1196 = vmatmul.f32.gmra.mxu0 %v748
        %v1197 = vpop.f32.mrf.mxu0
        %v1198 = vadd.f32 0.0, %v1197
        %1199 = vmatmul.f32.gmra.mxu0 %v751
        %v1200 = vpop.f32.mrf.mxu0
        %v1201 = vadd.f32 0.0, %v1200
        %1202 = vmatmul.f32.gmra.mxu0 %v754
        %v1203 = vpop.f32.mrf.mxu0
        %v1204 = vadd.f32 0.0, %v1203
        %1205 = vmatmul.f32.gmra.mxu0 %v757
        %v1206 = vpop.f32.mrf.mxu0
        %v1207 = vadd.f32 0.0, %v1206
        %1208 = vmatmul.f32.gmra.mxu0 %v760
        %v1209 = vpop.f32.mrf.mxu0
        %v1210 = vadd.f32 0.0, %v1209
        %1211 = vmatmul.f32.gmra.mxu0 %v763
        %v1212 = vpop.f32.mrf.mxu0
        %v1213 = vadd.f32 0.0, %v1212
        %1214 = vmatmul.f32.gmra.mxu0 %v766
        %v1215 = vpop.f32.mrf.mxu0
        %v1216 = vadd.f32 0.0, %v1215
        %1217 = vmatmul.f32.gmra.mxu0 %v769
        %v1218 = vpop.f32.mrf.mxu0
        %v1219 = vadd.f32 0.0, %v1218
        %1220 = vdwg.mxu0
        %1221 = vmatpush.msra.mxu0 %v323
        %1222 = vmatpush.msra.mxu0 %v322
        %1223 = vmatpush.msra.mxu0 %v321
        %1224 = vmatpush.msra.mxu0 %v320
        %1225 = vmatpush.msra.mxu0 %v319
        %1226 = vmatpush.msra.mxu0 %v318
        %1227 = vmatpush.msra.mxu0 %v317
        %1228 = vmatpush.msra.mxu0 %v316
        %1229 = vmatpush.msra.mxu0 %v315
        %1230 = vmatpush.msra.mxu0 %v314
        %1231 = vmatpush.msra.mxu0 %v313
        %1232 = vmatpush.msra.mxu0 %v312
        %1233 = vmatpush.msra.mxu0 %v311
        %1234 = vmatpush.msra.mxu0 %v310
        %1235 = vmatpush.msra.mxu0 %v309
        %1236 = vmatpush.msra.mxu0 %v308
        %1237 = vmatmul.f32.gmra.mxu0 %v341
        %v1238 = vpop.f32.mrf.mxu0
        %v1239 = vadd.f32 %v790, %v1238
        %1240 = vmatmul.f32.gmra.mxu0 %v344
        %v1241 = vpop.f32.mrf.mxu0
        %v1242 = vadd.f32 %v793, %v1241
        %1243 = vmatmul.f32.gmra.mxu0 %v347
        %v1244 = vpop.f32.mrf.mxu0
        %v1245 = vadd.f32 %v796, %v1244
        %1246 = vmatmul.f32.gmra.mxu0 %v350
        %v1247 = vpop.f32.mrf.mxu0
        %v1248 = vadd.f32 %v799, %v1247
        %1249 = vmatmul.f32.gmra.mxu0 %v353
        %v1250 = vpop.f32.mrf.mxu0
        %v1251 = vadd.f32 %v802, %v1250
        %1252 = vmatmul.f32.gmra.mxu0 %v356
        %v1253 = vpop.f32.mrf.mxu0
        %v1254 = vadd.f32 %v805, %v1253
        %1255 = vmatmul.f32.gmra.mxu0 %v359
        %v1256 = vpop.f32.mrf.mxu0
        %v1257 = vadd.f32 %v808, %v1256
        %1258 = vmatmul.f32.gmra.mxu0 %v362
        %v1259 = vpop.f32.mrf.mxu0
        %v1260 = vadd.f32 %v811, %v1259
        %1261 = vmatmul.f32.gmra.mxu0 %v365
        %v1262 = vpop.f32.mrf.mxu0
        %v1263 = vadd.f32 %v814, %v1262
        %1264 = vmatmul.f32.gmra.mxu0 %v368
        %v1265 = vpop.f32.mrf.mxu0
        %v1266 = vadd.f32 %v817, %v1265
        %1267 = vmatmul.f32.gmra.mxu0 %v371
        %v1268 = vpop.f32.mrf.mxu0
        %v1269 = vadd.f32 %v820, %v1268
        %1270 = vmatmul.f32.gmra.mxu0 %v374
        %v1271 = vpop.f32.mrf.mxu0
        %v1272 = vadd.f32 %v823, %v1271
        %1273 = vmatmul.f32.gmra.mxu0 %v377
        %v1274 = vpop.f32.mrf.mxu0
        %v1275 = vadd.f32 %v826, %v1274
        %1276 = vmatmul.f32.gmra.mxu0 %v380
        %v1277 = vpop.f32.mrf.mxu0
        %v1278 = vadd.f32 %v829, %v1277
        %1279 = vmatmul.f32.gmra.mxu0 %v383
        %v1280 = vpop.f32.mrf.mxu0
        %v1281 = vadd.f32 %v832, %v1280
        %1282 = vmatmul.f32.gmra.mxu0 %v386
        %v1283 = vpop.f32.mrf.mxu0
        %v1284 = vadd.f32 %v835, %v1283
        %1285 = vmatmul.f32.gmra.mxu0 %v389
        %v1286 = vpop.f32.mrf.mxu0
        %v1287 = vadd.f32 %v838, %v1286
        %1288 = vmatmul.f32.gmra.mxu0 %v392
        %v1289 = vpop.f32.mrf.mxu0
        %v1290 = vadd.f32 %v841, %v1289
        %1291 = vmatmul.f32.gmra.mxu0 %v395
        %v1292 = vpop.f32.mrf.mxu0
        %v1293 = vadd.f32 %v844, %v1292
        %1294 = vmatmul.f32.gmra.mxu0 %v398
        %v1295 = vpop.f32.mrf.mxu0
        %v1296 = vadd.f32 %v847, %v1295
        %1297 = vmatmul.f32.gmra.mxu0 %v401
        %v1298 = vpop.f32.mrf.mxu0
        %v1299 = vadd.f32 %v850, %v1298
        %1300 = vmatmul.f32.gmra.mxu0 %v404
        %v1301 = vpop.f32.mrf.mxu0
        %v1302 = vadd.f32 %v853, %v1301
        %1303 = vmatmul.f32.gmra.mxu0 %v407
        %v1304 = vpop.f32.mrf.mxu0
        %v1305 = vadd.f32 %v856, %v1304
        %1306 = vmatmul.f32.gmra.mxu0 %v410
        %v1307 = vpop.f32.mrf.mxu0
        %v1308 = vadd.f32 %v859, %v1307
        %1309 = vmatmul.f32.gmra.mxu0 %v413
        %v1310 = vpop.f32.mrf.mxu0
        %v1311 = vadd.f32 %v862, %v1310
        %1312 = vmatmul.f32.gmra.mxu0 %v416
        %v1313 = vpop.f32.mrf.mxu0
        %v1314 = vadd.f32 %v865, %v1313
        %1315 = vmatmul.f32.gmra.mxu0 %v419
        %v1316 = vpop.f32.mrf.mxu0
        %v1317 = vadd.f32 %v868, %v1316
        %1318 = vmatmul.f32.gmra.mxu0 %v422
        %v1319 = vpop.f32.mrf.mxu0
        %v1320 = vadd.f32 %v871, %v1319
        %1321 = vmatmul.f32.gmra.mxu0 %v425
        %v1322 = vpop.f32.mrf.mxu0
        %v1323 = vadd.f32 %v874, %v1322
        %1324 = vmatmul.f32.gmra.mxu0 %v428
        %v1325 = vpop.f32.mrf.mxu0
        %v1326 = vadd.f32 %v877, %v1325
        %1327 = vmatmul.f32.gmra.mxu0 %v431
        %v1328 = vpop.f32.mrf.mxu0
        %v1329 = vadd.f32 %v880, %v1328
        %1330 = vmatmul.f32.gmra.mxu0 %v434
        %v1331 = vpop.f32.mrf.mxu0
        %v1332 = vadd.f32 %v883, %v1331
        %1333 = vmatmul.f32.gmra.mxu0 %v437
        %v1334 = vpop.f32.mrf.mxu0
        %v1335 = vadd.f32 %v886, %v1334
        %1336 = vmatmul.f32.gmra.mxu0 %v440
        %v1337 = vpop.f32.mrf.mxu0
        %v1338 = vadd.f32 %v889, %v1337
        %1339 = vmatmul.f32.gmra.mxu0 %v443
        %v1340 = vpop.f32.mrf.mxu0
        %v1341 = vadd.f32 %v892, %v1340
        %1342 = vmatmul.f32.gmra.mxu0 %v446
        %v1343 = vpop.f32.mrf.mxu0
        %v1344 = vadd.f32 %v895, %v1343
        %1345 = vmatmul.f32.gmra.mxu0 %v449
        %v1346 = vpop.f32.mrf.mxu0
        %v1347 = vadd.f32 %v898, %v1346
        %1348 = vmatmul.f32.gmra.mxu0 %v452
        %v1349 = vpop.f32.mrf.mxu0
        %v1350 = vadd.f32 %v901, %v1349
        %1351 = vmatmul.f32.gmra.mxu0 %v455
        %v1352 = vpop.f32.mrf.mxu0
        %v1353 = vadd.f32 %v904, %v1352
        %1354 = vmatmul.f32.gmra.mxu0 %v458
        %v1355 = vpop.f32.mrf.mxu0
        %v1356 = vadd.f32 %v907, %v1355
        %1357 = vmatmul.f32.gmra.mxu0 %v461
        %v1358 = vpop.f32.mrf.mxu0
        %v1359 = vadd.f32 %v910, %v1358
        %1360 = vmatmul.f32.gmra.mxu0 %v464
        %v1361 = vpop.f32.mrf.mxu0
        %v1362 = vadd.f32 %v913, %v1361
        %1363 = vmatmul.f32.gmra.mxu0 %v467
        %v1364 = vpop.f32.mrf.mxu0
        %v1365 = vadd.f32 %v916, %v1364
        %1366 = vmatmul.f32.gmra.mxu0 %v470
        %v1367 = vpop.f32.mrf.mxu0
        %v1368 = vadd.f32 %v919, %v1367
        %1369 = vmatmul.f32.gmra.mxu0 %v473
        %v1370 = vpop.f32.mrf.mxu0
        %v1371 = vadd.f32 %v922, %v1370
        %1372 = vmatmul.f32.gmra.mxu0 %v476
        %v1373 = vpop.f32.mrf.mxu0
        %v1374 = vadd.f32 %v925, %v1373
        %1375 = vmatmul.f32.gmra.mxu0 %v479
        %v1376 = vpop.f32.mrf.mxu0
        %v1377 = vadd.f32 %v928, %v1376
        %1378 = vmatmul.f32.gmra.mxu0 %v482
        %v1379 = vpop.f32.mrf.mxu0
        %v1380 = vadd.f32 %v931, %v1379
        %1381 = vmatmul.f32.gmra.mxu0 %v485
        %v1382 = vpop.f32.mrf.mxu0
        %v1383 = vadd.f32 %v934, %v1382
        %1384 = vmatmul.f32.gmra.mxu0 %v488
        %v1385 = vpop.f32.mrf.mxu0
        %v1386 = vadd.f32 %v937, %v1385
        %1387 = vmatmul.f32.gmra.mxu0 %v491
        %v1388 = vpop.f32.mrf.mxu0
        %v1389 = vadd.f32 %v940, %v1388
        %1390 = vmatmul.f32.gmra.mxu0 %v494
        %v1391 = vpop.f32.mrf.mxu0
        %v1392 = vadd.f32 %v943, %v1391
        %1393 = vmatmul.f32.gmra.mxu0 %v497
        %v1394 = vpop.f32.mrf.mxu0
        %v1395 = vadd.f32 %v946, %v1394
        %1396 = vmatmul.f32.gmra.mxu0 %v500
        %v1397 = vpop.f32.mrf.mxu0
        %v1398 = vadd.f32 %v949, %v1397
        %1399 = vmatmul.f32.gmra.mxu0 %v503
        %v1400 = vpop.f32.mrf.mxu0
        %v1401 = vadd.f32 %v952, %v1400
        %1402 = vmatmul.f32.gmra.mxu0 %v506
        %v1403 = vpop.f32.mrf.mxu0
        %v1404 = vadd.f32 %v955, %v1403
        %1405 = vmatmul.f32.gmra.mxu0 %v509
        %v1406 = vpop.f32.mrf.mxu0
        %v1407 = vadd.f32 %v958, %v1406
        %1408 = vmatmul.f32.gmra.mxu0 %v512
        %v1409 = vpop.f32.mrf.mxu0
        %v1410 = vadd.f32 %v961, %v1409
        %1411 = vmatmul.f32.gmra.mxu0 %v515
        %v1412 = vpop.f32.mrf.mxu0
        %v1413 = vadd.f32 %v964, %v1412
        %1414 = vmatmul.f32.gmra.mxu0 %v518
        %v1415 = vpop.f32.mrf.mxu0
        %v1416 = vadd.f32 %v967, %v1415
        %1417 = vmatmul.f32.gmra.mxu0 %v521
        %v1418 = vpop.f32.mrf.mxu0
        %v1419 = vadd.f32 %v970, %v1418
        %1420 = vmatmul.f32.gmra.mxu0 %v524
        %v1421 = vpop.f32.mrf.mxu0
        %v1422 = vadd.f32 %v973, %v1421
        %1423 = vmatmul.f32.gmra.mxu0 %v527
        %v1424 = vpop.f32.mrf.mxu0
        %v1425 = vadd.f32 %v976, %v1424
        %1426 = vmatmul.f32.gmra.mxu0 %v530
        %v1427 = vpop.f32.mrf.mxu0
        %v1428 = vadd.f32 %v979, %v1427
        %1429 = vmatmul.f32.gmra.mxu0 %v533
        %v1430 = vpop.f32.mrf.mxu0
        %v1431 = vadd.f32 %v982, %v1430
        %1432 = vmatmul.f32.gmra.mxu0 %v536
        %v1433 = vpop.f32.mrf.mxu0
        %v1434 = vadd.f32 %v985, %v1433
        %1435 = vmatmul.f32.gmra.mxu0 %v539
        %v1436 = vpop.f32.mrf.mxu0
        %v1437 = vadd.f32 %v988, %v1436
        %1438 = vmatmul.f32.gmra.mxu0 %v542
        %v1439 = vpop.f32.mrf.mxu0
        %v1440 = vadd.f32 %v991, %v1439
        %1441 = vmatmul.f32.gmra.mxu0 %v545
        %v1442 = vpop.f32.mrf.mxu0
        %v1443 = vadd.f32 %v994, %v1442
        %1444 = vmatmul.f32.gmra.mxu0 %v548
        %v1445 = vpop.f32.mrf.mxu0
        %v1446 = vadd.f32 %v997, %v1445
        %1447 = vmatmul.f32.gmra.mxu0 %v551
        %v1448 = vpop.f32.mrf.mxu0
        %v1449 = vadd.f32 %v1000, %v1448
        %1450 = vmatmul.f32.gmra.mxu0 %v554
        %v1451 = vpop.f32.mrf.mxu0
        %v1452 = vadd.f32 %v1003, %v1451
        %1453 = vmatmul.f32.gmra.mxu0 %v557
        %v1454 = vpop.f32.mrf.mxu0
        %v1455 = vadd.f32 %v1006, %v1454
        %1456 = vmatmul.f32.gmra.mxu0 %v560
        %v1457 = vpop.f32.mrf.mxu0
        %v1458 = vadd.f32 %v1009, %v1457
        %1459 = vmatmul.f32.gmra.mxu0 %v563
        %v1460 = vpop.f32.mrf.mxu0
        %v1461 = vadd.f32 %v1012, %v1460
        %1462 = vmatmul.f32.gmra.mxu0 %v566
        %v1463 = vpop.f32.mrf.mxu0
        %v1464 = vadd.f32 %v1015, %v1463
        %1465 = vmatmul.f32.gmra.mxu0 %v569
        %v1466 = vpop.f32.mrf.mxu0
        %v1467 = vadd.f32 %v1018, %v1466
        %1468 = vmatmul.f32.gmra.mxu0 %v572
        %v1469 = vpop.f32.mrf.mxu0
        %v1470 = vadd.f32 %v1021, %v1469
        %1471 = vmatmul.f32.gmra.mxu0 %v575
        %v1472 = vpop.f32.mrf.mxu0
        %v1473 = vadd.f32 %v1024, %v1472
        %1474 = vmatmul.f32.gmra.mxu0 %v578
        %v1475 = vpop.f32.mrf.mxu0
        %v1476 = vadd.f32 %v1027, %v1475
        %1477 = vmatmul.f32.gmra.mxu0 %v581
        %v1478 = vpop.f32.mrf.mxu0
        %v1479 = vadd.f32 %v1030, %v1478
        %1480 = vmatmul.f32.gmra.mxu0 %v584
        %v1481 = vpop.f32.mrf.mxu0
        %v1482 = vadd.f32 %v1033, %v1481
        %1483 = vmatmul.f32.gmra.mxu0 %v587
        %v1484 = vpop.f32.mrf.mxu0
        %v1485 = vadd.f32 %v1036, %v1484
        %1486 = vmatmul.f32.gmra.mxu0 %v590
        %v1487 = vpop.f32.mrf.mxu0
        %v1488 = vadd.f32 %v1039, %v1487
        %1489 = vmatmul.f32.gmra.mxu0 %v593
        %v1490 = vpop.f32.mrf.mxu0
        %v1491 = vadd.f32 %v1042, %v1490
        %1492 = vmatmul.f32.gmra.mxu0 %v596
        %v1493 = vpop.f32.mrf.mxu0
        %v1494 = vadd.f32 %v1045, %v1493
        %1495 = vmatmul.f32.gmra.mxu0 %v599
        %v1496 = vpop.f32.mrf.mxu0
        %v1497 = vadd.f32 %v1048, %v1496
        %1498 = vmatmul.f32.gmra.mxu0 %v602
        %v1499 = vpop.f32.mrf.mxu0
        %v1500 = vadd.f32 %v1051, %v1499
        %1501 = vmatmul.f32.gmra.mxu0 %v605
        %v1502 = vpop.f32.mrf.mxu0
        %v1503 = vadd.f32 %v1054, %v1502
        %1504 = vmatmul.f32.gmra.mxu0 %v608
        %v1505 = vpop.f32.mrf.mxu0
        %v1506 = vadd.f32 %v1057, %v1505
        %1507 = vmatmul.f32.gmra.mxu0 %v611
        %v1508 = vpop.f32.mrf.mxu0
        %v1509 = vadd.f32 %v1060, %v1508
        %1510 = vmatmul.f32.gmra.mxu0 %v614
        %v1511 = vpop.f32.mrf.mxu0
        %v1512 = vadd.f32 %v1063, %v1511
        %1513 = vmatmul.f32.gmra.mxu0 %v617
        %v1514 = vpop.f32.mrf.mxu0
        %v1515 = vadd.f32 %v1066, %v1514
        %1516 = vmatmul.f32.gmra.mxu0 %v620
        %v1517 = vpop.f32.mrf.mxu0
        %v1518 = vadd.f32 %v1069, %v1517
        %1519 = vmatmul.f32.gmra.mxu0 %v623
        %v1520 = vpop.f32.mrf.mxu0
        %v1521 = vadd.f32 %v1072, %v1520
        %1522 = vmatmul.f32.gmra.mxu0 %v626
        %v1523 = vpop.f32.mrf.mxu0
        %v1524 = vadd.f32 %v1075, %v1523
        %1525 = vmatmul.f32.gmra.mxu0 %v629
        %v1526 = vpop.f32.mrf.mxu0
        %v1527 = vadd.f32 %v1078, %v1526
        %1528 = vmatmul.f32.gmra.mxu0 %v632
        %v1529 = vpop.f32.mrf.mxu0
        %v1530 = vadd.f32 %v1081, %v1529
        %1531 = vmatmul.f32.gmra.mxu0 %v635
        %v1532 = vpop.f32.mrf.mxu0
        %v1533 = vadd.f32 %v1084, %v1532
        %1534 = vmatmul.f32.gmra.mxu0 %v638
        %v1535 = vpop.f32.mrf.mxu0
        %v1536 = vadd.f32 %v1087, %v1535
        %1537 = vmatmul.f32.gmra.mxu0 %v641
        %v1538 = vpop.f32.mrf.mxu0
        %v1539 = vadd.f32 %v1090, %v1538
        %1540 = vmatmul.f32.gmra.mxu0 %v644
        %v1541 = vpop.f32.mrf.mxu0
        %v1542 = vadd.f32 %v1093, %v1541
        %1543 = vmatmul.f32.gmra.mxu0 %v647
        %v1544 = vpop.f32.mrf.mxu0
        %v1545 = vadd.f32 %v1096, %v1544
        %1546 = vmatmul.f32.gmra.mxu0 %v650
        %v1547 = vpop.f32.mrf.mxu0
        %v1548 = vadd.f32 %v1099, %v1547
        %1549 = vmatmul.f32.gmra.mxu0 %v653
        %v1550 = vpop.f32.mrf.mxu0
        %v1551 = vadd.f32 %v1102, %v1550
        %1552 = vmatmul.f32.gmra.mxu0 %v656
        %v1553 = vpop.f32.mrf.mxu0
        %v1554 = vadd.f32 %v1105, %v1553
        %1555 = vmatmul.f32.gmra.mxu0 %v659
        %v1556 = vpop.f32.mrf.mxu0
        %v1557 = vadd.f32 %v1108, %v1556
        %1558 = vmatmul.f32.gmra.mxu0 %v662
        %v1559 = vpop.f32.mrf.mxu0
        %v1560 = vadd.f32 %v1111, %v1559
        %1561 = vmatmul.f32.gmra.mxu0 %v665
        %v1562 = vpop.f32.mrf.mxu0
        %v1563 = vadd.f32 %v1114, %v1562
        %1564 = vmatmul.f32.gmra.mxu0 %v668
        %v1565 = vpop.f32.mrf.mxu0
        %v1566 = vadd.f32 %v1117, %v1565
        %1567 = vmatmul.f32.gmra.mxu0 %v671
        %v1568 = vpop.f32.mrf.mxu0
        %v1569 = vadd.f32 %v1120, %v1568
        %1570 = vmatmul.f32.gmra.mxu0 %v674
        %v1571 = vpop.f32.mrf.mxu0
        %v1572 = vadd.f32 %v1123, %v1571
        %1573 = vmatmul.f32.gmra.mxu0 %v677
        %v1574 = vpop.f32.mrf.mxu0
        %v1575 = vadd.f32 %v1126, %v1574
        %1576 = vmatmul.f32.gmra.mxu0 %v680
        %v1577 = vpop.f32.mrf.mxu0
        %v1578 = vadd.f32 %v1129, %v1577
        %1579 = vmatmul.f32.gmra.mxu0 %v683
        %v1580 = vpop.f32.mrf.mxu0
        %v1581 = vadd.f32 %v1132, %v1580
        %1582 = vmatmul.f32.gmra.mxu0 %v686
        %v1583 = vpop.f32.mrf.mxu0
        %v1584 = vadd.f32 %v1135, %v1583
        %1585 = vmatmul.f32.gmra.mxu0 %v689
        %v1586 = vpop.f32.mrf.mxu0
        %v1587 = vadd.f32 %v1138, %v1586
        %1588 = vmatmul.f32.gmra.mxu0 %v692
        %v1589 = vpop.f32.mrf.mxu0
        %v1590 = vadd.f32 %v1141, %v1589
        %1591 = vmatmul.f32.gmra.mxu0 %v695
        %v1592 = vpop.f32.mrf.mxu0
        %v1593 = vadd.f32 %v1144, %v1592
        %1594 = vmatmul.f32.gmra.mxu0 %v698
        %v1595 = vpop.f32.mrf.mxu0
        %v1596 = vadd.f32 %v1147, %v1595
        %1597 = vmatmul.f32.gmra.mxu0 %v701
        %v1598 = vpop.f32.mrf.mxu0
        %v1599 = vadd.f32 %v1150, %v1598
        %1600 = vmatmul.f32.gmra.mxu0 %v704
        %v1601 = vpop.f32.mrf.mxu0
        %v1602 = vadd.f32 %v1153, %v1601
        %1603 = vmatmul.f32.gmra.mxu0 %v707
        %v1604 = vpop.f32.mrf.mxu0
        %v1605 = vadd.f32 %v1156, %v1604
        %1606 = vmatmul.f32.gmra.mxu0 %v710
        %v1607 = vpop.f32.mrf.mxu0
        %v1608 = vadd.f32 %v1159, %v1607
        %1609 = vmatmul.f32.gmra.mxu0 %v713
        %v1610 = vpop.f32.mrf.mxu0
        %v1611 = vadd.f32 %v1162, %v1610
        %1612 = vmatmul.f32.gmra.mxu0 %v716
        %v1613 = vpop.f32.mrf.mxu0
        %v1614 = vadd.f32 %v1165, %v1613
        %1615 = vmatmul.f32.gmra.mxu0 %v719
        %v1616 = vpop.f32.mrf.mxu0
        %v1617 = vadd.f32 %v1168, %v1616
        %1618 = vmatmul.f32.gmra.mxu0 %v722
        %v1619 = vpop.f32.mrf.mxu0
        %v1620 = vadd.f32 %v1171, %v1619
        %1621 = vmatmul.f32.gmra.mxu0 %v725
        %v1622 = vpop.f32.mrf.mxu0
        %v1623 = vadd.f32 %v1174, %v1622
        %1624 = vmatmul.f32.gmra.mxu0 %v728
        %v1625 = vpop.f32.mrf.mxu0
        %v1626 = vadd.f32 %v1177, %v1625
        %1627 = vmatmul.f32.gmra.mxu0 %v731
        %v1628 = vpop.f32.mrf.mxu0
        %v1629 = vadd.f32 %v1180, %v1628
        %1630 = vmatmul.f32.gmra.mxu0 %v734
        %v1631 = vpop.f32.mrf.mxu0
        %v1632 = vadd.f32 %v1183, %v1631
        %1633 = vmatmul.f32.gmra.mxu0 %v737
        %v1634 = vpop.f32.mrf.mxu0
        %v1635 = vadd.f32 %v1186, %v1634
        %1636 = vmatmul.f32.gmra.mxu0 %v740
        %v1637 = vpop.f32.mrf.mxu0
        %v1638 = vadd.f32 %v1189, %v1637
        %1639 = vmatmul.f32.gmra.mxu0 %v743
        %v1640 = vpop.f32.mrf.mxu0
        %v1641 = vadd.f32 %v1192, %v1640
        %1642 = vmatmul.f32.gmra.mxu0 %v746
        %v1643 = vpop.f32.mrf.mxu0
        %v1644 = vadd.f32 %v1195, %v1643
        %1645 = vmatmul.f32.gmra.mxu0 %v749
        %v1646 = vpop.f32.mrf.mxu0
        %v1647 = vadd.f32 %v1198, %v1646
        %1648 = vmatmul.f32.gmra.mxu0 %v752
        %v1649 = vpop.f32.mrf.mxu0
        %v1650 = vadd.f32 %v1201, %v1649
        %1651 = vmatmul.f32.gmra.mxu0 %v755
        %v1652 = vpop.f32.mrf.mxu0
        %v1653 = vadd.f32 %v1204, %v1652
        %1654 = vmatmul.f32.gmra.mxu0 %v758
        %v1655 = vpop.f32.mrf.mxu0
        %v1656 = vadd.f32 %v1207, %v1655
        %1657 = vmatmul.f32.gmra.mxu0 %v761
        %v1658 = vpop.f32.mrf.mxu0
        %v1659 = vadd.f32 %v1210, %v1658
        %1660 = vmatmul.f32.gmra.mxu0 %v764
        %v1661 = vpop.f32.mrf.mxu0
        %v1662 = vadd.f32 %v1213, %v1661
        %1663 = vmatmul.f32.gmra.mxu0 %v767
        %v1664 = vpop.f32.mrf.mxu0
        %v1665 = vadd.f32 %v1216, %v1664
        %1666 = vmatmul.f32.gmra.mxu0 %v770
        %v1667 = vpop.f32.mrf.mxu0
        %v1668 = vadd.f32 %v1219, %v1667
        %1669 = vdwg.mxu0
        %1670 = vmatpush.msra.mxu0 %v339
        %1671 = vmatpush.msra.mxu0 %v338
        %1672 = vmatpush.msra.mxu0 %v337
        %1673 = vmatpush.msra.mxu0 %v336
        %1674 = vmatpush.msra.mxu0 %v335
        %1675 = vmatpush.msra.mxu0 %v334
        %1676 = vmatpush.msra.mxu0 %v333
        %1677 = vmatpush.msra.mxu0 %v332
        %1678 = vmatpush.msra.mxu0 %v331
        %1679 = vmatpush.msra.mxu0 %v330
        %1680 = vmatpush.msra.mxu0 %v329
        %1681 = vmatpush.msra.mxu0 %v328
        %1682 = vmatpush.msra.mxu0 %v327
        %1683 = vmatpush.msra.mxu0 %v326
        %1684 = vmatpush.msra.mxu0 %v325
        %1685 = vmatpush.msra.mxu0 %v324
        %1686 = vmatmul.f32.gmra.mxu0 %v342
        %v1687 = vpop.f32.mrf.mxu0
        %v1688 = vadd.f32 %v1239, %v1687
        %1689 = vmatmul.f32.gmra.mxu0 %v345
        %v1690 = vpop.f32.mrf.mxu0
        %v1691 = vadd.f32 %v1242, %v1690
        %1692 = vmatmul.f32.gmra.mxu0 %v348
        %v1693 = vpop.f32.mrf.mxu0
        %v1694 = vadd.f32 %v1245, %v1693
        %1695 = vmatmul.f32.gmra.mxu0 %v351
        %v1696 = vpop.f32.mrf.mxu0
        %v1697 = vadd.f32 %v1248, %v1696
        %1698 = vmatmul.f32.gmra.mxu0 %v354
        %v1699 = vpop.f32.mrf.mxu0
        %v1700 = vadd.f32 %v1251, %v1699
        %1701 = vmatmul.f32.gmra.mxu0 %v357
        %v1702 = vpop.f32.mrf.mxu0
        %v1703 = vadd.f32 %v1254, %v1702
        %1704 = vmatmul.f32.gmra.mxu0 %v360
        %v1705 = vpop.f32.mrf.mxu0
        %v1706 = vadd.f32 %v1257, %v1705
        %1707 = vmatmul.f32.gmra.mxu0 %v363
        %v1708 = vpop.f32.mrf.mxu0
        %v1709 = vadd.f32 %v1260, %v1708
        %1710 = vmatmul.f32.gmra.mxu0 %v366
        %v1711 = vpop.f32.mrf.mxu0
        %v1712 = vadd.f32 %v1263, %v1711
        %1713 = vmatmul.f32.gmra.mxu0 %v369
        %v1714 = vpop.f32.mrf.mxu0
        %v1715 = vadd.f32 %v1266, %v1714
        %1716 = vmatmul.f32.gmra.mxu0 %v372
        %v1717 = vpop.f32.mrf.mxu0
        %v1718 = vadd.f32 %v1269, %v1717
        %1719 = vmatmul.f32.gmra.mxu0 %v375
        %v1720 = vpop.f32.mrf.mxu0
        %v1721 = vadd.f32 %v1272, %v1720
        %1722 = vmatmul.f32.gmra.mxu0 %v378
        %v1723 = vpop.f32.mrf.mxu0
        %v1724 = vadd.f32 %v1275, %v1723
        %1725 = vmatmul.f32.gmra.mxu0 %v381
        %v1726 = vpop.f32.mrf.mxu0
        %v1727 = vadd.f32 %v1278, %v1726
        %1728 = vmatmul.f32.gmra.mxu0 %v384
        %v1729 = vpop.f32.mrf.mxu0
        %v1730 = vadd.f32 %v1281, %v1729
        %1731 = vmatmul.f32.gmra.mxu0 %v387
        %v1732 = vpop.f32.mrf.mxu0
        %v1733 = vadd.f32 %v1284, %v1732
        %1734 = vmatmul.f32.gmra.mxu0 %v390
        %v1735 = vpop.f32.mrf.mxu0
        %v1736 = vadd.f32 %v1287, %v1735
        %1737 = vmatmul.f32.gmra.mxu0 %v393
        %v1738 = vpop.f32.mrf.mxu0
        %v1739 = vadd.f32 %v1290, %v1738
        %1740 = vmatmul.f32.gmra.mxu0 %v396
        %v1741 = vpop.f32.mrf.mxu0
        %v1742 = vadd.f32 %v1293, %v1741
        %1743 = vmatmul.f32.gmra.mxu0 %v399
        %v1744 = vpop.f32.mrf.mxu0
        %v1745 = vadd.f32 %v1296, %v1744
        %1746 = vmatmul.f32.gmra.mxu0 %v402
        %v1747 = vpop.f32.mrf.mxu0
        %v1748 = vadd.f32 %v1299, %v1747
        %1749 = vmatmul.f32.gmra.mxu0 %v405
        %v1750 = vpop.f32.mrf.mxu0
        %v1751 = vadd.f32 %v1302, %v1750
        %1752 = vmatmul.f32.gmra.mxu0 %v408
        %v1753 = vpop.f32.mrf.mxu0
        %v1754 = vadd.f32 %v1305, %v1753
        %1755 = vmatmul.f32.gmra.mxu0 %v411
        %v1756 = vpop.f32.mrf.mxu0
        %v1757 = vadd.f32 %v1308, %v1756
        %1758 = vmatmul.f32.gmra.mxu0 %v414
        %v1759 = vpop.f32.mrf.mxu0
        %v1760 = vadd.f32 %v1311, %v1759
        %1761 = vmatmul.f32.gmra.mxu0 %v417
        %v1762 = vpop.f32.mrf.mxu0
        %v1763 = vadd.f32 %v1314, %v1762
        %1764 = vmatmul.f32.gmra.mxu0 %v420
        %v1765 = vpop.f32.mrf.mxu0
        %v1766 = vadd.f32 %v1317, %v1765
        %1767 = vmatmul.f32.gmra.mxu0 %v423
        %v1768 = vpop.f32.mrf.mxu0
        %v1769 = vadd.f32 %v1320, %v1768
        %1770 = vmatmul.f32.gmra.mxu0 %v426
        %v1771 = vpop.f32.mrf.mxu0
        %v1772 = vadd.f32 %v1323, %v1771
        %1773 = vmatmul.f32.gmra.mxu0 %v429
        %v1774 = vpop.f32.mrf.mxu0
        %v1775 = vadd.f32 %v1326, %v1774
        %1776 = vmatmul.f32.gmra.mxu0 %v432
        %v1777 = vpop.f32.mrf.mxu0
        %v1778 = vadd.f32 %v1329, %v1777
        %1779 = vmatmul.f32.gmra.mxu0 %v435
        %v1780 = vpop.f32.mrf.mxu0
        %v1781 = vadd.f32 %v1332, %v1780
        %1782 = vmatmul.f32.gmra.mxu0 %v438
        %v1783 = vpop.f32.mrf.mxu0
        %v1784 = vadd.f32 %v1335, %v1783
        %1785 = vmatmul.f32.gmra.mxu0 %v441
        %v1786 = vpop.f32.mrf.mxu0
        %v1787 = vadd.f32 %v1338, %v1786
        %1788 = vmatmul.f32.gmra.mxu0 %v444
        %v1789 = vpop.f32.mrf.mxu0
        %v1790 = vadd.f32 %v1341, %v1789
        %1791 = vmatmul.f32.gmra.mxu0 %v447
        %v1792 = vpop.f32.mrf.mxu0
        %v1793 = vadd.f32 %v1344, %v1792
        %1794 = vmatmul.f32.gmra.mxu0 %v450
        %v1795 = vpop.f32.mrf.mxu0
        %v1796 = vadd.f32 %v1347, %v1795
        %1797 = vmatmul.f32.gmra.mxu0 %v453
        %v1798 = vpop.f32.mrf.mxu0
        %v1799 = vadd.f32 %v1350, %v1798
        %1800 = vmatmul.f32.gmra.mxu0 %v456
        %v1801 = vpop.f32.mrf.mxu0
        %v1802 = vadd.f32 %v1353, %v1801
        %1803 = vmatmul.f32.gmra.mxu0 %v459
        %v1804 = vpop.f32.mrf.mxu0
        %v1805 = vadd.f32 %v1356, %v1804
        %1806 = vmatmul.f32.gmra.mxu0 %v462
        %v1807 = vpop.f32.mrf.mxu0
        %v1808 = vadd.f32 %v1359, %v1807
        %1809 = vmatmul.f32.gmra.mxu0 %v465
        %v1810 = vpop.f32.mrf.mxu0
        %v1811 = vadd.f32 %v1362, %v1810
        %1812 = vmatmul.f32.gmra.mxu0 %v468
        %v1813 = vpop.f32.mrf.mxu0
        %v1814 = vadd.f32 %v1365, %v1813
        %1815 = vmatmul.f32.gmra.mxu0 %v471
        %v1816 = vpop.f32.mrf.mxu0
        %v1817 = vadd.f32 %v1368, %v1816
        %1818 = vmatmul.f32.gmra.mxu0 %v474
        %v1819 = vpop.f32.mrf.mxu0
        %v1820 = vadd.f32 %v1371, %v1819
        %1821 = vmatmul.f32.gmra.mxu0 %v477
        %v1822 = vpop.f32.mrf.mxu0
        %v1823 = vadd.f32 %v1374, %v1822
        %1824 = vmatmul.f32.gmra.mxu0 %v480
        %v1825 = vpop.f32.mrf.mxu0
        %v1826 = vadd.f32 %v1377, %v1825
        %1827 = vmatmul.f32.gmra.mxu0 %v483
        %v1828 = vpop.f32.mrf.mxu0
        %v1829 = vadd.f32 %v1380, %v1828
        %1830 = vmatmul.f32.gmra.mxu0 %v486
        %v1831 = vpop.f32.mrf.mxu0
        %v1832 = vadd.f32 %v1383, %v1831
        %1833 = vmatmul.f32.gmra.mxu0 %v489
        %v1834 = vpop.f32.mrf.mxu0
        %v1835 = vadd.f32 %v1386, %v1834
        %1836 = vmatmul.f32.gmra.mxu0 %v492
        %v1837 = vpop.f32.mrf.mxu0
        %v1838 = vadd.f32 %v1389, %v1837
        %1839 = vmatmul.f32.gmra.mxu0 %v495
        %v1840 = vpop.f32.mrf.mxu0
        %v1841 = vadd.f32 %v1392, %v1840
        %1842 = vmatmul.f32.gmra.mxu0 %v498
        %v1843 = vpop.f32.mrf.mxu0
        %v1844 = vadd.f32 %v1395, %v1843
        %1845 = vmatmul.f32.gmra.mxu0 %v501
        %v1846 = vpop.f32.mrf.mxu0
        %v1847 = vadd.f32 %v1398, %v1846
        %1848 = vmatmul.f32.gmra.mxu0 %v504
        %v1849 = vpop.f32.mrf.mxu0
        %v1850 = vadd.f32 %v1401, %v1849
        %1851 = vmatmul.f32.gmra.mxu0 %v507
        %v1852 = vpop.f32.mrf.mxu0
        %v1853 = vadd.f32 %v1404, %v1852
        %1854 = vmatmul.f32.gmra.mxu0 %v510
        %v1855 = vpop.f32.mrf.mxu0
        %v1856 = vadd.f32 %v1407, %v1855
        %1857 = vmatmul.f32.gmra.mxu0 %v513
        %v1858 = vpop.f32.mrf.mxu0
        %v1859 = vadd.f32 %v1410, %v1858
        %1860 = vmatmul.f32.gmra.mxu0 %v516
        %v1861 = vpop.f32.mrf.mxu0
        %v1862 = vadd.f32 %v1413, %v1861
        %1863 = vmatmul.f32.gmra.mxu0 %v519
        %v1864 = vpop.f32.mrf.mxu0
        %v1865 = vadd.f32 %v1416, %v1864
        %1866 = vmatmul.f32.gmra.mxu0 %v522
        %v1867 = vpop.f32.mrf.mxu0
        %v1868 = vadd.f32 %v1419, %v1867
        %1869 = vmatmul.f32.gmra.mxu0 %v525
        %v1870 = vpop.f32.mrf.mxu0
        %v1871 = vadd.f32 %v1422, %v1870
        %1872 = vmatmul.f32.gmra.mxu0 %v528
        %v1873 = vpop.f32.mrf.mxu0
        %v1874 = vadd.f32 %v1425, %v1873
        %1875 = vmatmul.f32.gmra.mxu0 %v531
        %v1876 = vpop.f32.mrf.mxu0
        %v1877 = vadd.f32 %v1428, %v1876
        %1878 = vmatmul.f32.gmra.mxu0 %v534
        %v1879 = vpop.f32.mrf.mxu0
        %v1880 = vadd.f32 %v1431, %v1879
        %1881 = vmatmul.f32.gmra.mxu0 %v537
        %v1882 = vpop.f32.mrf.mxu0
        %v1883 = vadd.f32 %v1434, %v1882
        %1884 = vmatmul.f32.gmra.mxu0 %v540
        %v1885 = vpop.f32.mrf.mxu0
        %v1886 = vadd.f32 %v1437, %v1885
        %1887 = vmatmul.f32.gmra.mxu0 %v543
        %v1888 = vpop.f32.mrf.mxu0
        %v1889 = vadd.f32 %v1440, %v1888
        %1890 = vmatmul.f32.gmra.mxu0 %v546
        %v1891 = vpop.f32.mrf.mxu0
        %v1892 = vadd.f32 %v1443, %v1891
        %1893 = vmatmul.f32.gmra.mxu0 %v549
        %v1894 = vpop.f32.mrf.mxu0
        %v1895 = vadd.f32 %v1446, %v1894
        %1896 = vmatmul.f32.gmra.mxu0 %v552
        %v1897 = vpop.f32.mrf.mxu0
        %v1898 = vadd.f32 %v1449, %v1897
        %1899 = vmatmul.f32.gmra.mxu0 %v555
        %v1900 = vpop.f32.mrf.mxu0
        %v1901 = vadd.f32 %v1452, %v1900
        %1902 = vmatmul.f32.gmra.mxu0 %v558
        %v1903 = vpop.f32.mrf.mxu0
        %v1904 = vadd.f32 %v1455, %v1903
        %1905 = vmatmul.f32.gmra.mxu0 %v561
        %v1906 = vpop.f32.mrf.mxu0
        %v1907 = vadd.f32 %v1458, %v1906
        %1908 = vmatmul.f32.gmra.mxu0 %v564
        %v1909 = vpop.f32.mrf.mxu0
        %v1910 = vadd.f32 %v1461, %v1909
        %1911 = vmatmul.f32.gmra.mxu0 %v567
        %v1912 = vpop.f32.mrf.mxu0
        %v1913 = vadd.f32 %v1464, %v1912
        %1914 = vmatmul.f32.gmra.mxu0 %v570
        %v1915 = vpop.f32.mrf.mxu0
        %v1916 = vadd.f32 %v1467, %v1915
        %1917 = vmatmul.f32.gmra.mxu0 %v573
        %v1918 = vpop.f32.mrf.mxu0
        %v1919 = vadd.f32 %v1470, %v1918
        %1920 = vmatmul.f32.gmra.mxu0 %v576
        %v1921 = vpop.f32.mrf.mxu0
        %v1922 = vadd.f32 %v1473, %v1921
        %1923 = vmatmul.f32.gmra.mxu0 %v579
        %v1924 = vpop.f32.mrf.mxu0
        %v1925 = vadd.f32 %v1476, %v1924
        %1926 = vmatmul.f32.gmra.mxu0 %v582
        %v1927 = vpop.f32.mrf.mxu0
        %v1928 = vadd.f32 %v1479, %v1927
        %1929 = vmatmul.f32.gmra.mxu0 %v585
        %v1930 = vpop.f32.mrf.mxu0
        %v1931 = vadd.f32 %v1482, %v1930
        %1932 = vmatmul.f32.gmra.mxu0 %v588
        %v1933 = vpop.f32.mrf.mxu0
        %v1934 = vadd.f32 %v1485, %v1933
        %1935 = vmatmul.f32.gmra.mxu0 %v591
        %v1936 = vpop.f32.mrf.mxu0
        %v1937 = vadd.f32 %v1488, %v1936
        %1938 = vmatmul.f32.gmra.mxu0 %v594
        %v1939 = vpop.f32.mrf.mxu0
        %v1940 = vadd.f32 %v1491, %v1939
        %1941 = vmatmul.f32.gmra.mxu0 %v597
        %v1942 = vpop.f32.mrf.mxu0
        %v1943 = vadd.f32 %v1494, %v1942
        %1944 = vmatmul.f32.gmra.mxu0 %v600
        %v1945 = vpop.f32.mrf.mxu0
        %v1946 = vadd.f32 %v1497, %v1945
        %1947 = vmatmul.f32.gmra.mxu0 %v603
        %v1948 = vpop.f32.mrf.mxu0
        %v1949 = vadd.f32 %v1500, %v1948
        %1950 = vmatmul.f32.gmra.mxu0 %v606
        %v1951 = vpop.f32.mrf.mxu0
        %v1952 = vadd.f32 %v1503, %v1951
        %1953 = vmatmul.f32.gmra.mxu0 %v609
        %v1954 = vpop.f32.mrf.mxu0
        %v1955 = vadd.f32 %v1506, %v1954
        %1956 = vmatmul.f32.gmra.mxu0 %v612
        %v1957 = vpop.f32.mrf.mxu0
        %v1958 = vadd.f32 %v1509, %v1957
        %1959 = vmatmul.f32.gmra.mxu0 %v615
        %v1960 = vpop.f32.mrf.mxu0
        %v1961 = vadd.f32 %v1512, %v1960
        %1962 = vmatmul.f32.gmra.mxu0 %v618
        %v1963 = vpop.f32.mrf.mxu0
        %v1964 = vadd.f32 %v1515, %v1963
        %1965 = vmatmul.f32.gmra.mxu0 %v621
        %v1966 = vpop.f32.mrf.mxu0
        %v1967 = vadd.f32 %v1518, %v1966
        %1968 = vmatmul.f32.gmra.mxu0 %v624
        %v1969 = vpop.f32.mrf.mxu0
        %v1970 = vadd.f32 %v1521, %v1969
        %1971 = vmatmul.f32.gmra.mxu0 %v627
        %v1972 = vpop.f32.mrf.mxu0
        %v1973 = vadd.f32 %v1524, %v1972
        %1974 = vmatmul.f32.gmra.mxu0 %v630
        %v1975 = vpop.f32.mrf.mxu0
        %v1976 = vadd.f32 %v1527, %v1975
        %1977 = vmatmul.f32.gmra.mxu0 %v633
        %v1978 = vpop.f32.mrf.mxu0
        %v1979 = vadd.f32 %v1530, %v1978
        %1980 = vmatmul.f32.gmra.mxu0 %v636
        %v1981 = vpop.f32.mrf.mxu0
        %v1982 = vadd.f32 %v1533, %v1981
        %1983 = vmatmul.f32.gmra.mxu0 %v639
        %v1984 = vpop.f32.mrf.mxu0
        %v1985 = vadd.f32 %v1536, %v1984
        %1986 = vmatmul.f32.gmra.mxu0 %v642
        %v1987 = vpop.f32.mrf.mxu0
        %v1988 = vadd.f32 %v1539, %v1987
        %1989 = vmatmul.f32.gmra.mxu0 %v645
        %v1990 = vpop.f32.mrf.mxu0
        %v1991 = vadd.f32 %v1542, %v1990
        %1992 = vmatmul.f32.gmra.mxu0 %v648
        %v1993 = vpop.f32.mrf.mxu0
        %v1994 = vadd.f32 %v1545, %v1993
        %1995 = vmatmul.f32.gmra.mxu0 %v651
        %v1996 = vpop.f32.mrf.mxu0
        %v1997 = vadd.f32 %v1548, %v1996
        %1998 = vmatmul.f32.gmra.mxu0 %v654
        %v1999 = vpop.f32.mrf.mxu0
        %v2000 = vadd.f32 %v1551, %v1999
        %2001 = vmatmul.f32.gmra.mxu0 %v657
        %v2002 = vpop.f32.mrf.mxu0
        %v2003 = vadd.f32 %v1554, %v2002
        %2004 = vmatmul.f32.gmra.mxu0 %v660
        %v2005 = vpop.f32.mrf.mxu0
        %v2006 = vadd.f32 %v1557, %v2005
        %2007 = vmatmul.f32.gmra.mxu0 %v663
        %v2008 = vpop.f32.mrf.mxu0
        %v2009 = vadd.f32 %v1560, %v2008
        %2010 = vmatmul.f32.gmra.mxu0 %v666
        %v2011 = vpop.f32.mrf.mxu0
        %v2012 = vadd.f32 %v1563, %v2011
        %2013 = vmatmul.f32.gmra.mxu0 %v669
        %v2014 = vpop.f32.mrf.mxu0
        %v2015 = vadd.f32 %v1566, %v2014
        %2016 = vmatmul.f32.gmra.mxu0 %v672
        %v2017 = vpop.f32.mrf.mxu0
        %v2018 = vadd.f32 %v1569, %v2017
        %2019 = vmatmul.f32.gmra.mxu0 %v675
        %v2020 = vpop.f32.mrf.mxu0
        %v2021 = vadd.f32 %v1572, %v2020
        %2022 = vmatmul.f32.gmra.mxu0 %v678
        %v2023 = vpop.f32.mrf.mxu0
        %v2024 = vadd.f32 %v1575, %v2023
        %2025 = vmatmul.f32.gmra.mxu0 %v681
        %v2026 = vpop.f32.mrf.mxu0
        %v2027 = vadd.f32 %v1578, %v2026
        %2028 = vmatmul.f32.gmra.mxu0 %v684
        %v2029 = vpop.f32.mrf.mxu0
        %v2030 = vadd.f32 %v1581, %v2029
        %2031 = vmatmul.f32.gmra.mxu0 %v687
        %v2032 = vpop.f32.mrf.mxu0
        %v2033 = vadd.f32 %v1584, %v2032
        %2034 = vmatmul.f32.gmra.mxu0 %v690
        %v2035 = vpop.f32.mrf.mxu0
        %v2036 = vadd.f32 %v1587, %v2035
        %2037 = vmatmul.f32.gmra.mxu0 %v693
        %v2038 = vpop.f32.mrf.mxu0
        %v2039 = vadd.f32 %v1590, %v2038
        %2040 = vmatmul.f32.gmra.mxu0 %v696
        %v2041 = vpop.f32.mrf.mxu0
        %v2042 = vadd.f32 %v1593, %v2041
        %2043 = vmatmul.f32.gmra.mxu0 %v699
        %v2044 = vpop.f32.mrf.mxu0
        %v2045 = vadd.f32 %v1596, %v2044
        %2046 = vmatmul.f32.gmra.mxu0 %v702
        %v2047 = vpop.f32.mrf.mxu0
        %v2048 = vadd.f32 %v1599, %v2047
        %2049 = vmatmul.f32.gmra.mxu0 %v705
        %v2050 = vpop.f32.mrf.mxu0
        %v2051 = vadd.f32 %v1602, %v2050
        %2052 = vmatmul.f32.gmra.mxu0 %v708
        %v2053 = vpop.f32.mrf.mxu0
        %v2054 = vadd.f32 %v1605, %v2053
        %2055 = vmatmul.f32.gmra.mxu0 %v711
        %v2056 = vpop.f32.mrf.mxu0
        %v2057 = vadd.f32 %v1608, %v2056
        %2058 = vmatmul.f32.gmra.mxu0 %v714
        %v2059 = vpop.f32.mrf.mxu0
        %v2060 = vadd.f32 %v1611, %v2059
        %2061 = vmatmul.f32.gmra.mxu0 %v717
        %v2062 = vpop.f32.mrf.mxu0
        %v2063 = vadd.f32 %v1614, %v2062
        %2064 = vmatmul.f32.gmra.mxu0 %v720
        %v2065 = vpop.f32.mrf.mxu0
        %v2066 = vadd.f32 %v1617, %v2065
        %2067 = vmatmul.f32.gmra.mxu0 %v723
        %v2068 = vpop.f32.mrf.mxu0
        %v2069 = vadd.f32 %v1620, %v2068
        %2070 = vmatmul.f32.gmra.mxu0 %v726
        %v2071 = vpop.f32.mrf.mxu0
        %v2072 = vadd.f32 %v1623, %v2071
        %2073 = vmatmul.f32.gmra.mxu0 %v729
        %v2074 = vpop.f32.mrf.mxu0
        %v2075 = vadd.f32 %v1626, %v2074
        %2076 = vmatmul.f32.gmra.mxu0 %v732
        %v2077 = vpop.f32.mrf.mxu0
        %v2078 = vadd.f32 %v1629, %v2077
        %2079 = vmatmul.f32.gmra.mxu0 %v735
        %v2080 = vpop.f32.mrf.mxu0
        %v2081 = vadd.f32 %v1632, %v2080
        %2082 = vmatmul.f32.gmra.mxu0 %v738
        %v2083 = vpop.f32.mrf.mxu0
        %v2084 = vadd.f32 %v1635, %v2083
        %2085 = vmatmul.f32.gmra.mxu0 %v741
        %v2086 = vpop.f32.mrf.mxu0
        %v2087 = vadd.f32 %v1638, %v2086
        %2088 = vmatmul.f32.gmra.mxu0 %v744
        %v2089 = vpop.f32.mrf.mxu0
        %v2090 = vadd.f32 %v1641, %v2089
        %2091 = vmatmul.f32.gmra.mxu0 %v747
        %v2092 = vpop.f32.mrf.mxu0
        %v2093 = vadd.f32 %v1644, %v2092
        %2094 = vmatmul.f32.gmra.mxu0 %v750
        %v2095 = vpop.f32.mrf.mxu0
        %v2096 = vadd.f32 %v1647, %v2095
        %2097 = vmatmul.f32.gmra.mxu0 %v753
        %v2098 = vpop.f32.mrf.mxu0
        %v2099 = vadd.f32 %v1650, %v2098
        %2100 = vmatmul.f32.gmra.mxu0 %v756
        %v2101 = vpop.f32.mrf.mxu0
        %v2102 = vadd.f32 %v1653, %v2101
        %2103 = vmatmul.f32.gmra.mxu0 %v759
        %v2104 = vpop.f32.mrf.mxu0
        %v2105 = vadd.f32 %v1656, %v2104
        %2106 = vmatmul.f32.gmra.mxu0 %v762
        %v2107 = vpop.f32.mrf.mxu0
        %v2108 = vadd.f32 %v1659, %v2107
        %2109 = vmatmul.f32.gmra.mxu0 %v765
        %v2110 = vpop.f32.mrf.mxu0
        %v2111 = vadd.f32 %v1662, %v2110
        %2112 = vmatmul.f32.gmra.mxu0 %v768
        %v2113 = vpop.f32.mrf.mxu0
        %v2114 = vadd.f32 %v1665, %v2113
        %2115 = vmatmul.f32.gmra.mxu0 %v771
        %v2116 = vpop.f32.mrf.mxu0
        %v2117 = vadd.f32 %v1668, %v2116
        %2118 = vdwg.mxu0
        %vm2119 = vcmask 400384
        %2120 = vst.msk [vmem:[%s194] sm:$0xff] %vm2119, %v1688
        %2121 = vst.msk [vmem:[%s194 + $0x8] sm:$0xff] %vm2119, %v1691
        %2122 = vst.msk [vmem:[%s194 + $0x10] sm:$0xff] %vm2119, %v1694
        %2123 = vst.msk [vmem:[%s194 + $0x18] sm:$0xff] %vm2119, %v1697
        %2124 = vst.msk [vmem:[%s194 + $0x20] sm:$0xff] %vm2119, %v1700
        %2125 = vst.msk [vmem:[%s194 + $0x28] sm:$0xff] %vm2119, %v1703
        %2126 = vst.msk [vmem:[%s194 + $0x30] sm:$0xff] %vm2119, %v1706
        %2127 = vst.msk [vmem:[%s194 + $0x38] sm:$0xff] %vm2119, %v1709
        %2128 = vst.msk [vmem:[%s194 + $0x40] sm:$0xff] %vm2119, %v1712
        %2129 = vst.msk [vmem:[%s194 + $0x48] sm:$0xff] %vm2119, %v1715
        %2130 = vst.msk [vmem:[%s194 + $0x50] sm:$0xff] %vm2119, %v1718
        %2131 = vst.msk [vmem:[%s194 + $0x58] sm:$0xff] %vm2119, %v1721
        %2132 = vst.msk [vmem:[%s194 + $0x60] sm:$0xff] %vm2119, %v1724
        %2133 = vst.msk [vmem:[%s194 + $0x68] sm:$0xff] %vm2119, %v1727
        %2134 = vst.msk [vmem:[%s194 + $0x70] sm:$0xff] %vm2119, %v1730
        %2135 = vst.msk [vmem:[%s194 + $0x78] sm:$0xff] %vm2119, %v1733
        %2136 = vst.msk [vmem:[%s194 + $0x80] sm:$0xff] %vm2119, %v1736
        %2137 = vst.msk [vmem:[%s194 + $0x88] sm:$0xff] %vm2119, %v1739
        %2138 = vst.msk [vmem:[%s194 + $0x90] sm:$0xff] %vm2119, %v1742
        %2139 = vst.msk [vmem:[%s194 + $0x98] sm:$0xff] %vm2119, %v1745
        %2140 = vst.msk [vmem:[%s194 + $0xa0] sm:$0xff] %vm2119, %v1748
        %2141 = vst.msk [vmem:[%s194 + $0xa8] sm:$0xff] %vm2119, %v1751
        %2142 = vst.msk [vmem:[%s194 + $0xb0] sm:$0xff] %vm2119, %v1754
        %2143 = vst.msk [vmem:[%s194 + $0xb8] sm:$0xff] %vm2119, %v1757
        %2144 = vst.msk [vmem:[%s194 + $0xc0] sm:$0xff] %vm2119, %v1760
        %2145 = vst.msk [vmem:[%s194 + $0xc8] sm:$0xff] %vm2119, %v1763
        %2146 = vst.msk [vmem:[%s194 + $0xd0] sm:$0xff] %vm2119, %v1766
        %2147 = vst.msk [vmem:[%s194 + $0xd8] sm:$0xff] %vm2119, %v1769
        %2148 = vst.msk [vmem:[%s194 + $0xe0] sm:$0xff] %vm2119, %v1772
        %2149 = vst.msk [vmem:[%s194 + $0xe8] sm:$0xff] %vm2119, %v1775
        %2150 = vst.msk [vmem:[%s194 + $0xf0] sm:$0xff] %vm2119, %v1778
        %2151 = vst.msk [vmem:[%s194 + $0xf8] sm:$0xff] %vm2119, %v1781
        %2152 = vst.msk [vmem:[%s194 + $0x100] sm:$0xff] %vm2119, %v1784
        %2153 = vst.msk [vmem:[%s194 + $0x108] sm:$0xff] %vm2119, %v1787
        %2154 = vst.msk [vmem:[%s194 + $0x110] sm:$0xff] %vm2119, %v1790
        %2155 = vst.msk [vmem:[%s194 + $0x118] sm:$0xff] %vm2119, %v1793
        %2156 = vst.msk [vmem:[%s194 + $0x120] sm:$0xff] %vm2119, %v1796
        %2157 = vst.msk [vmem:[%s194 + $0x128] sm:$0xff] %vm2119, %v1799
        %2158 = vst.msk [vmem:[%s194 + $0x130] sm:$0xff] %vm2119, %v1802
        %2159 = vst.msk [vmem:[%s194 + $0x138] sm:$0xff] %vm2119, %v1805
        %2160 = vst.msk [vmem:[%s194 + $0x140] sm:$0xff] %vm2119, %v1808
        %2161 = vst.msk [vmem:[%s194 + $0x148] sm:$0xff] %vm2119, %v1811
        %2162 = vst.msk [vmem:[%s194 + $0x150] sm:$0xff] %vm2119, %v1814
        %2163 = vst.msk [vmem:[%s194 + $0x158] sm:$0xff] %vm2119, %v1817
        %2164 = vst.msk [vmem:[%s194 + $0x160] sm:$0xff] %vm2119, %v1820
        %2165 = vst.msk [vmem:[%s194 + $0x168] sm:$0xff] %vm2119, %v1823
        %2166 = vst.msk [vmem:[%s194 + $0x170] sm:$0xff] %vm2119, %v1826
        %2167 = vst.msk [vmem:[%s194 + $0x178] sm:$0xff] %vm2119, %v1829
        %2168 = vst.msk [vmem:[%s194 + $0x180] sm:$0xff] %vm2119, %v1832
        %2169 = vst.msk [vmem:[%s194 + $0x188] sm:$0xff] %vm2119, %v1835
        %2170 = vst.msk [vmem:[%s194 + $0x190] sm:$0xff] %vm2119, %v1838
        %2171 = vst.msk [vmem:[%s194 + $0x198] sm:$0xff] %vm2119, %v1841
        %2172 = vst.msk [vmem:[%s194 + $0x1a0] sm:$0xff] %vm2119, %v1844
        %2173 = vst.msk [vmem:[%s194 + $0x1a8] sm:$0xff] %vm2119, %v1847
        %2174 = vst.msk [vmem:[%s194 + $0x1b0] sm:$0xff] %vm2119, %v1850
        %2175 = vst.msk [vmem:[%s194 + $0x1b8] sm:$0xff] %vm2119, %v1853
        %2176 = vst.msk [vmem:[%s194 + $0x1c0] sm:$0xff] %vm2119, %v1856
        %2177 = vst.msk [vmem:[%s194 + $0x1c8] sm:$0xff] %vm2119, %v1859
        %2178 = vst.msk [vmem:[%s194 + $0x1d0] sm:$0xff] %vm2119, %v1862
        %2179 = vst.msk [vmem:[%s194 + $0x1d8] sm:$0xff] %vm2119, %v1865
        %2180 = vst.msk [vmem:[%s194 + $0x1e0] sm:$0xff] %vm2119, %v1868
        %2181 = vst.msk [vmem:[%s194 + $0x1e8] sm:$0xff] %vm2119, %v1871
        %2182 = vst.msk [vmem:[%s194 + $0x1f0] sm:$0xff] %vm2119, %v1874
        %2183 = vst.msk [vmem:[%s194 + $0x1f8] sm:$0xff] %vm2119, %v1877
        %2184 = vst.msk [vmem:[%s194 + $0x200] sm:$0xff] %vm2119, %v1880
        %2185 = vst.msk [vmem:[%s194 + $0x208] sm:$0xff] %vm2119, %v1883
        %2186 = vst.msk [vmem:[%s194 + $0x210] sm:$0xff] %vm2119, %v1886
        %2187 = vst.msk [vmem:[%s194 + $0x218] sm:$0xff] %vm2119, %v1889
        %2188 = vst.msk [vmem:[%s194 + $0x220] sm:$0xff] %vm2119, %v1892
        %2189 = vst.msk [vmem:[%s194 + $0x228] sm:$0xff] %vm2119, %v1895
        %2190 = vst.msk [vmem:[%s194 + $0x230] sm:$0xff] %vm2119, %v1898
        %2191 = vst.msk [vmem:[%s194 + $0x238] sm:$0xff] %vm2119, %v1901
        %2192 = vst.msk [vmem:[%s194 + $0x240] sm:$0xff] %vm2119, %v1904
        %2193 = vst.msk [vmem:[%s194 + $0x248] sm:$0xff] %vm2119, %v1907
        %2194 = vst.msk [vmem:[%s194 + $0x250] sm:$0xff] %vm2119, %v1910
        %2195 = vst.msk [vmem:[%s194 + $0x258] sm:$0xff] %vm2119, %v1913
        %2196 = vst.msk [vmem:[%s194 + $0x260] sm:$0xff] %vm2119, %v1916
        %2197 = vst.msk [vmem:[%s194 + $0x268] sm:$0xff] %vm2119, %v1919
        %2198 = vst.msk [vmem:[%s194 + $0x270] sm:$0xff] %vm2119, %v1922
        %2199 = vst.msk [vmem:[%s194 + $0x278] sm:$0xff] %vm2119, %v1925
        %2200 = vst.msk [vmem:[%s194 + $0x280] sm:$0xff] %vm2119, %v1928
        %2201 = vst.msk [vmem:[%s194 + $0x288] sm:$0xff] %vm2119, %v1931
        %2202 = vst.msk [vmem:[%s194 + $0x290] sm:$0xff] %vm2119, %v1934
        %2203 = vst.msk [vmem:[%s194 + $0x298] sm:$0xff] %vm2119, %v1937
        %2204 = vst.msk [vmem:[%s194 + $0x2a0] sm:$0xff] %vm2119, %v1940
        %2205 = vst.msk [vmem:[%s194 + $0x2a8] sm:$0xff] %vm2119, %v1943
        %2206 = vst.msk [vmem:[%s194 + $0x2b0] sm:$0xff] %vm2119, %v1946
        %2207 = vst.msk [vmem:[%s194 + $0x2b8] sm:$0xff] %vm2119, %v1949
        %2208 = vst.msk [vmem:[%s194 + $0x2c0] sm:$0xff] %vm2119, %v1952
        %2209 = vst.msk [vmem:[%s194 + $0x2c8] sm:$0xff] %vm2119, %v1955
        %2210 = vst.msk [vmem:[%s194 + $0x2d0] sm:$0xff] %vm2119, %v1958
        %2211 = vst.msk [vmem:[%s194 + $0x2d8] sm:$0xff] %vm2119, %v1961
        %2212 = vst.msk [vmem:[%s194 + $0x2e0] sm:$0xff] %vm2119, %v1964
        %2213 = vst.msk [vmem:[%s194 + $0x2e8] sm:$0xff] %vm2119, %v1967
        %2214 = vst.msk [vmem:[%s194 + $0x2f0] sm:$0xff] %vm2119, %v1970
        %2215 = vst.msk [vmem:[%s194 + $0x2f8] sm:$0xff] %vm2119, %v1973
        %2216 = vst.msk [vmem:[%s194 + $0x300] sm:$0xff] %vm2119, %v1976
        %2217 = vst.msk [vmem:[%s194 + $0x308] sm:$0xff] %vm2119, %v1979
        %2218 = vst.msk [vmem:[%s194 + $0x310] sm:$0xff] %vm2119, %v1982
        %2219 = vst.msk [vmem:[%s194 + $0x318] sm:$0xff] %vm2119, %v1985
        %2220 = vst.msk [vmem:[%s194 + $0x320] sm:$0xff] %vm2119, %v1988
        %2221 = vst.msk [vmem:[%s194 + $0x328] sm:$0xff] %vm2119, %v1991
        %2222 = vst.msk [vmem:[%s194 + $0x330] sm:$0xff] %vm2119, %v1994
        %2223 = vst.msk [vmem:[%s194 + $0x338] sm:$0xff] %vm2119, %v1997
        %2224 = vst.msk [vmem:[%s194 + $0x340] sm:$0xff] %vm2119, %v2000
        %2225 = vst.msk [vmem:[%s194 + $0x348] sm:$0xff] %vm2119, %v2003
        %2226 = vst.msk [vmem:[%s194 + $0x350] sm:$0xff] %vm2119, %v2006
        %2227 = vst.msk [vmem:[%s194 + $0x358] sm:$0xff] %vm2119, %v2009
        %2228 = vst.msk [vmem:[%s194 + $0x360] sm:$0xff] %vm2119, %v2012
        %2229 = vst.msk [vmem:[%s194 + $0x368] sm:$0xff] %vm2119, %v2015
        %2230 = vst.msk [vmem:[%s194 + $0x370] sm:$0xff] %vm2119, %v2018
        %2231 = vst.msk [vmem:[%s194 + $0x378] sm:$0xff] %vm2119, %v2021
        %2232 = vst.msk [vmem:[%s194 + $0x380] sm:$0xff] %vm2119, %v2024
        %2233 = vst.msk [vmem:[%s194 + $0x388] sm:$0xff] %vm2119, %v2027
        %2234 = vst.msk [vmem:[%s194 + $0x390] sm:$0xff] %vm2119, %v2030
        %2235 = vst.msk [vmem:[%s194 + $0x398] sm:$0xff] %vm2119, %v2033
        %2236 = vst.msk [vmem:[%s194 + $0x3a0] sm:$0xff] %vm2119, %v2036
        %2237 = vst.msk [vmem:[%s194 + $0x3a8] sm:$0xff] %vm2119, %v2039
        %2238 = vst.msk [vmem:[%s194 + $0x3b0] sm:$0xff] %vm2119, %v2042
        %2239 = vst.msk [vmem:[%s194 + $0x3b8] sm:$0xff] %vm2119, %v2045
        %2240 = vst.msk [vmem:[%s194 + $0x3c0] sm:$0xff] %vm2119, %v2048
        %2241 = vst.msk [vmem:[%s194 + $0x3c8] sm:$0xff] %vm2119, %v2051
        %2242 = vst.msk [vmem:[%s194 + $0x3d0] sm:$0xff] %vm2119, %v2054
        %2243 = vst.msk [vmem:[%s194 + $0x3d8] sm:$0xff] %vm2119, %v2057
        %2244 = vst.msk [vmem:[%s194 + $0x3e0] sm:$0xff] %vm2119, %v2060
        %2245 = vst.msk [vmem:[%s194 + $0x3e8] sm:$0xff] %vm2119, %v2063
        %2246 = vst.msk [vmem:[%s194 + $0x3f0] sm:$0xff] %vm2119, %v2066
        %2247 = vst.msk [vmem:[%s194 + $0x3f8] sm:$0xff] %vm2119, %v2069
        %2248 = vst.msk [vmem:[%s194 + $0x400] sm:$0xff] %vm2119, %v2072
        %2249 = vst.msk [vmem:[%s194 + $0x408] sm:$0xff] %vm2119, %v2075
        %2250 = vst.msk [vmem:[%s194 + $0x410] sm:$0xff] %vm2119, %v2078
        %2251 = vst.msk [vmem:[%s194 + $0x418] sm:$0xff] %vm2119, %v2081
        %2252 = vst.msk [vmem:[%s194 + $0x420] sm:$0xff] %vm2119, %v2084
        %2253 = vst.msk [vmem:[%s194 + $0x428] sm:$0xff] %vm2119, %v2087
        %2254 = vst.msk [vmem:[%s194 + $0x430] sm:$0xff] %vm2119, %v2090
        %2255 = vst.msk [vmem:[%s194 + $0x438] sm:$0xff] %vm2119, %v2093
        %2256 = vst.msk [vmem:[%s194 + $0x440] sm:$0xff] %vm2119, %v2096
        %2257 = vst.msk [vmem:[%s194 + $0x448] sm:$0xff] %vm2119, %v2099
        %2258 = vst.msk [vmem:[%s194 + $0x450] sm:$0xff] %vm2119, %v2102
        %2259 = vst.msk [vmem:[%s194 + $0x458] sm:$0xff] %vm2119, %v2105
        %2260 = vst.msk [vmem:[%s194 + $0x460] sm:$0xff] %vm2119, %v2108
        %2261 = vst.msk [vmem:[%s194 + $0x468] sm:$0xff] %vm2119, %v2111
        %2262 = vst.msk [vmem:[%s194 + $0x470] sm:$0xff] %vm2119, %v2114
        %2263 = vst.msk [vmem:[%s194 + $0x478] sm:$0xff] %vm2119, %v2117
        %s2264 = smul.u32 144, %s17
        %p2265 = scmp.lt.s32.totalorder %s2264, 287
        %s2266 = scalar_select %p2265, %s2264, 287
        %s2267 = smul.addr %s2266, 8
        %s2268 = scalar_lea.vmem %s3, %s2267
        // Predicated region
        $region37: #{tpu_custom_call.1} parent=31 // pred_check
          %p2269 = pneg %p103
        $region38: #{tpu_custom_call.1} parent=31 // pred_check_branch
          %2271 = sbr.rel (%p2269) target = $region40
        $region39: #{tpu_custom_call.1} parent=31 // pred_region
          %s2272 = smul.u32 144, %s17
        $region40: #{tpu_custom_call.1} parent=31 // pred_fallthru
          _
      $region32: #{tpu_custom_call.1} parent=5 // pred_fallthru
        _
      %p2273 = scmp.le.s32.totalorder 2, %s12
      // Predicated region
      $region41: #{tpu_custom_call.1} parent=5 // pred_check
        %p2274 = pneg %p2273
      $region42: #{tpu_custom_call.1} parent=5 // pred_check_branch
        %2276 = sbr.rel (%p2274) target = $region44
      $region43: #{tpu_custom_call.1} parent=5 // pred_region
        %s2277 = ssub.s32 %s12, 2
        // Predicated region
        $region45: #{tpu_custom_call.1} parent=43 // pred_check
          %p2278 = pneg %p109
        $region46: #{tpu_custom_call.1} parent=43 // pred_check_branch
          %2280 = sbr.rel (%p2278) target = $region48
        $region47: #{tpu_custom_call.1} parent=43 // pred_region
          %s2281 = smul.u32 144, %s18
          %p2282 = scmp.lt.s32.totalorder %s2281, 287
          %s2283 = scalar_select %p2282, %s2281, 287
          %s2284 = smul.addr %s2283, 8
          %s2285 = scalar_lea.vmem %s3, %s2284
        $region48: #{tpu_custom_call.1} parent=43 // pred_fallthru
          _
      $region44: #{tpu_custom_call.1} parent=5 // pred_fallthru
        _
    $region6: #{tpu_custom_call.1} parent=1 // loop_footer
      %s16 = sadd.s32 1, %s12
    $region7: #{tpu_custom_call.1} parent=1 // loop_footer_branch
      %11 = sbr.rel target = $region3
    $region8: #{tpu_custom_call.1} parent=1 // loop_exit
      _
    %2286 = vsyncpa [#allocation3], 1
    %s2287 = scalar_lea.sflag [#allocation3], 1
    %2288 = vsyncpa %s2287, 1

</llo_original>
